<compile_context>
chip_gen: v7x
topology: tpu7x:2x2x1
jax: 0.10.0
libtpu: 0.0.40
codegen_flags: <defaults>
</compile_context>

<pallas_src>
import functools

import numpy as np
import jax
import jax.numpy as jnp
from jax.experimental import pallas as pl
from jax.experimental.pallas import tpu as pltpu

_VMEM_LIMIT = 48 * 1024 * 1024   # <= v7x physical 64 MiB per TensorCore


# ----------------------------------------------------------------------------
# Pallas kernels
# ----------------------------------------------------------------------------
def _matmul_affine_kernel(*refs, apply_relu, has_residual):
    """o = (a @ b) * scale + shift [+ residual] [ReLU]; bf16 operands, f32 acc."""
    if has_residual:
        a_ref, b_ref, scale_ref, shift_ref, res_ref, o_ref = refs
    else:
        a_ref, b_ref, scale_ref, shift_ref, o_ref = refs
    acc = jnp.dot(a_ref[...], b_ref[...], preferred_element_type=jnp.float32)
    out = acc * scale_ref[...] + shift_ref[...]
    if has_residual:
        out = out + res_ref[...].astype(jnp.float32)
    if apply_relu:
        out = jnp.maximum(out, 0.0)
    o_ref[...] = out.astype(o_ref.dtype)


def _mean_spatial_kernel(x_ref, o_ref):
    # x: (B, S, C) -> mean over S  ==  F.avg_pool2d(x, 7).view(B, -1)
    o_ref[...] = jnp.mean(x_ref[...].astype(jnp.float32), axis=1)


def _text_head_kernel(x_ref, yt_ref, w1_ref, b1_ref, w2_ref, b2_ref,
                      w3_ref, b3_ref, o_ref):
    # Fused text branch + fusion + classifier:
    #   y1 = relu(fc_text1(y)).view(B, 100)   (yt is y transposed to (B, 8, 100))
    #   y2 = relu(fc_text2(y1));  out = fc1(x + y2)
    y1 = jnp.sum(yt_ref[...] * w1_ref[...], axis=1) + b1_ref[...]     # (B, 100)
    y1 = jnp.maximum(y1, 0.0)
    y2 = jnp.dot(y1, w2_ref[...], preferred_element_type=jnp.float32) + b2_ref[...]
    y2 = jnp.maximum(y2, 0.0)                                         # (B, 512)
    t1 = x_ref[...] + y2
    o_ref[...] = jnp.dot(t1, w3_ref[...],
                         preferred_element_type=jnp.float32) + b3_ref[...]


# ----------------------------------------------------------------------------
# Matmul wrapper (adaptive M tiling, resident weight, fused BN/residual/ReLU)
# ----------------------------------------------------------------------------
def _choose_tm(M, K):
    """Row-tile: big enough to amortize per-grid-step overhead, small enough to
    keep the (TM x K) bf16 A tile comfortably in VMEM, and >= 2 grid steps when
    M allows so both v7x TensorCores stay busy."""
    budget = 4 * 1024 * 1024                      # bytes per A-tile buffer (bf16)
    best, best_key = 64, None
    for t in (1024, 896, 768, 640, 512, 384, 256, 128, 64):
        if t * K * 2 > budget:
            continue
        steps = -(-M // t)
        if M > 64 and steps < 2:
            continue                              # keep megacore parallelism
        key = (steps, steps * t - M)              # fewest steps, then least waste
        if best_key is None or key < best_key:
            best, best_key = t, key
    return best


def matmul_affine(a, b, scale, shift, *, apply_relu=False, residual=None,
                  out_dtype=jnp.bfloat16):
    """out = (a @ b) * scale + shift (+ residual) (+ ReLU).

    a:(M,K) b:(K,N) scale/shift:(N,).  bf16 operands, f32 accumulation.  The
    full (K,N) weight is resident in VMEM; the grid tiles M only (cdiv, masked
    ragged edge — no padding / slicing copies)."""
    M, K = a.shape
    K2, N = b.shape
    assert K == K2
    TM = _choose_tm(M, K)
    grid = (pl.cdiv(M, TM),)

    a = a.astype(jnp.bfloat16)
    b = b.astype(jnp.bfloat16)
    scale2 = scale.reshape(1, N).astype(jnp.float32)
    shift2 = shift.reshape(1, N).astype(jnp.float32)

    in_specs = [
        pl.BlockSpec((TM, K), lambda i: (i, 0)),     # A row tile, full K
        pl.BlockSpec((K, N), lambda i: (0, 0)),      # B resident (fetched once)
        pl.BlockSpec((1, N), lambda i: (0, 0)),      # folded-BN scale
        pl.BlockSpec((1, N), lambda i: (0, 0)),      # folded-BN shift
    ]
    args = [a, b, scale2, shift2]
    if residual is not None:
        in_specs.append(pl.BlockSpec((TM, N), lambda i: (i, 0)))
        args.append(residual.astype(jnp.bfloat16))

    return pl.pallas_call(
        functools.partial(_matmul_affine_kernel, apply_relu=apply_relu,
                          has_residual=residual is not None),
        out_shape=jax.ShapeDtypeStruct((M, N), out_dtype),
        grid=grid,
        in_specs=in_specs,
        out_specs=pl.BlockSpec((TM, N), lambda i: (i, 0)),
        compiler_params=pltpu.CompilerParams(
            dimension_semantics=("parallel",),
            vmem_limit_bytes=_VMEM_LIMIT,
        ),
    )(*args)


@jax.jit
def spatial_mean(x):
    """x: (B, S, C) bf16 -> (B, C) f32, mean over S (the 7x7 avg-pool)."""
    B, S, C = x.shape
    return pl.pallas_call(
        _mean_spatial_kernel,
        out_shape=jax.ShapeDtypeStruct((B, C), jnp.float32),
        compiler_params=pltpu.CompilerParams(vmem_limit_bytes=_VMEM_LIMIT),
    )(x)


@jax.jit
def text_head(x, y, w1, b1, w2, b2, w3, b3):
    """Fused text branch + fusion + fc1 in one tiny Pallas kernel."""
    B = x.shape[0]
    yt = jnp.transpose(y.astype(jnp.float32), (0, 2, 1))     # (B, 8, 100)
    return pl.pallas_call(
        _text_head_kernel,
        out_shape=jax.ShapeDtypeStruct((B, 4), jnp.float32),
        compiler_params=pltpu.CompilerParams(vmem_limit_bytes=_VMEM_LIMIT),
    )(x, yt,
      w1.reshape(1, 8, 1).astype(jnp.float32),
      b1.reshape(1, 1).astype(jnp.float32),
      w2.astype(jnp.float32), b2.reshape(1, -1).astype(jnp.float32),
      w3.astype(jnp.float32), b3.reshape(1, -1).astype(jnp.float32))


# ----------------------------------------------------------------------------
# Conv / pool glue around the Pallas matmul kernel
# ----------------------------------------------------------------------------
def _im2col(x, kh, kw, stride, padding):
    # x: (B, H, W, C) NHWC bf16 -> patches (B, Ho, Wo, kh*kw*C), emitted in bf16.
    B, H, W, C = x.shape
    xp = jnp.pad(x, ((0, 0), (padding, padding), (padding, padding), (0, 0)))
    Ho = (H + 2 * padding - kh) // stride + 1
    Wo = (W + 2 * padding - kw) // stride + 1
    cols = []
    for ki in range(kh):
        for kj in range(kw):
            cols.append(xp[:, ki:ki + stride * Ho:stride,
                           kj:kj + stride * Wo:stride, :])
    if len(cols) == 1:
        return cols[0], Ho, Wo
    return jnp.concatenate(cols, axis=-1), Ho, Wo


# TODO(synk): the im2col patches tensor is still materialized in HBM (bf16, so
# half the previous traffic); fully fusing the 3x3 tap loop into the matmul
# kernel (shifted/halo BlockSpecs) would cut activation traffic a further ~4-9x.
@functools.partial(jax.jit, static_argnames=("stride", "padding", "relu"))
def conv_bn(x, w, bn, *, stride, padding, relu, residual=None):
    """Conv2d (no bias, OIHW weights) + BatchNorm (eval) + opt. residual/ReLU."""
    O, I, kh, kw = w.shape
    patches, Ho, Wo = _im2col(x.astype(jnp.bfloat16), kh, kw, stride, padding)
    B = x.shape[0]
    a = patches.reshape(B * Ho * Wo, kh * kw * I)
    wmat = jnp.transpose(w, (2, 3, 1, 0)).reshape(kh * kw * I, O)
    scale = bn["gamma"] * jax.lax.rsqrt(bn["var"] + 1e-5)
    shift = bn["beta"] - bn["mean"] * scale
    res2d = None if residual is None else residual.reshape(B * Ho * Wo, O)
    out = matmul_affine(a, wmat, scale, shift, apply_relu=relu, residual=res2d)
    return out.reshape(B, Ho, Wo, O)


def maxpool_3x3_s2_p1(x):
    # TODO(synk): window max-pool kept as lax.reduce_window glue (not a matmul/
    # reduction hot path worth a dedicated Pallas kernel here).
    return jax.lax.reduce_window(
        x, jnp.array(-jnp.inf, dtype=x.dtype), jax.lax.max,
        window_dimensions=(1, 3, 3, 1),
        window_strides=(1, 2, 2, 1),
        padding=((0, 0), (1, 1), (1, 1), (0, 0)),
    )


def basic_block(x, blk):
    stride = blk["stride"]
    out = conv_bn(x, blk["conv1_w"], blk["bn1"],
                  stride=stride, padding=1, relu=True)
    if "down_w" in blk:
        identity = conv_bn(x, blk["down_w"], blk["down_bn"],
                           stride=stride, padding=0, relu=False)
    else:
        identity = x
    # conv2 + BN + residual add + ReLU all fused into one matmul epilogue.
    return conv_bn(out, blk["conv2_w"], blk["bn2"],
                   stride=1, padding=1, relu=True, residual=identity)


# ----------------------------------------------------------------------------
# Deterministic parameter initialization (synthetic, resnet34 shapes)
# ----------------------------------------------------------------------------
def init_params(key):
    it = iter(jax.random.split(key, 256))
    nk = lambda: next(it)

    def conv_w(o, i, k):
        fan_in = i * k * k
        return jax.random.normal(nk(), (o, i, k, k), jnp.float32) * np.sqrt(2.0 / fan_in)

    def bn_p(c):
        return dict(
            gamma=1.0 + 0.05 * jax.random.normal(nk(), (c,), jnp.float32),
            beta=0.05 * jax.random.normal(nk(), (c,), jnp.float32),
            mean=0.05 * jax.random.normal(nk(), (c,), jnp.float32),
            var=1.0 + 0.1 * jnp.abs(jax.random.normal(nk(), (c,), jnp.float32)),
        )

    def lin(i, o):
        w = jax.random.normal(nk(), (i, o), jnp.float32) * np.sqrt(1.0 / i)
        b = 0.01 * jax.random.normal(nk(), (o,), jnp.float32)
        return w, b

    def make_layer(in_c, out_c, n_blocks, stride):
        blocks = []
        for b in range(n_blocks):
            s = stride if b == 0 else 1
            ic = in_c if b == 0 else out_c
            blk = dict(
                stride=s,
                conv1_w=conv_w(out_c, ic, 3), bn1=bn_p(out_c),
                conv2_w=conv_w(out_c, out_c, 3), bn2=bn_p(out_c),
            )
            if s != 1 or ic != out_c:
                blk["down_w"] = conv_w(out_c, ic, 1)
                blk["down_bn"] = bn_p(out_c)
            blocks.append(blk)
        return blocks

    params = {"conv1_w": conv_w(64, 3, 7), "bn1": bn_p(64)}
    params["layer1"] = make_layer(64, 64, 3, 1)     # resnet34: [3, 4, 6, 3]
    params["layer2"] = make_layer(64, 128, 4, 2)
    params["layer3"] = make_layer(128, 256, 6, 2)
    params["layer4"] = make_layer(256, 512, 3, 2)
    params["fc_text1"] = lin(8, 1)      # torch Linear(8, 1)   (stored transposed)
    params["fc_text2"] = lin(100, 512)  # torch Linear(100, 512)
    params["fc1"] = lin(512, 4)         # torch Linear(512, 4)
    # note: fc2 = Linear(1024, 4) exists in __init__ but is unused in forward().
    return params


# ----------------------------------------------------------------------------
# QVSmodel.forward
# ----------------------------------------------------------------------------
def qvs_forward(params, x_nchw, y):
    # Image branch (resnet34 trunk), NHWC / bf16 activations.
    x = jnp.transpose(x_nchw.astype(jnp.bfloat16), (0, 2, 3, 1))  # NCHW -> NHWC
    x = conv_bn(x, params["conv1_w"], params["bn1"],
                stride=2, padding=3, relu=True)
    x = maxpool_3x3_s2_p1(x)
    for name in ("layer1", "layer2", "layer3", "layer4"):
        for blk in params[name]:
            x = basic_block(x, blk)
    B, H, W, C = x.shape                       # (B, 7, 7, 512)
    x = spatial_mean(x.reshape(B, H * W, C))   # (B, 512) == avg_pool2d(.,7).view

    # Text branch + fusion + classifier (single fused Pallas kernel).
    w1, b1 = params["fc_text1"]
    w2, b2 = params["fc_text2"]
    w3, b3 = params["fc1"]
    return text_head(x, y, w1, b1, w2, b2, w3, b3)


if __name__ == "__main__":
    key = jax.random.PRNGKey(0)
    pkey, xkey, ykey = jax.random.split(key, 3)
    params = init_params(pkey)
    # Smallest shapes consistent with the module: avg_pool2d(., 7) after the
    # resnet34 trunk requires 224x224 images; text input is (B, 100, 8).
    x = jax.random.normal(xkey, (2, 3, 224, 224), jnp.float32)
    y = jax.random.normal(ykey, (2, 100, 8), jnp.float32)

    out = jax.block_until_ready(qvs_forward(params, x, y))
    assert out.shape == (2, 4)
    assert bool(jnp.all(jnp.isfinite(out)))
    print("KERNEL_OK")
</pallas_src>

<mosaic_0001>
module attributes {stable_mosaic.version = 11 : i64} {
  func.func @_matmul_affine_kernel(%arg0: i32, %arg1: memref<1024x147xbf16, #tpu.memory_space<vmem>>, %arg2: memref<147x64xbf16, #tpu.memory_space<vmem>>, %arg3: memref<1x64xf32, #tpu.memory_space<vmem>>, %arg4: memref<1x64xf32, #tpu.memory_space<vmem>>, %arg5: memref<1024x64xbf16, #tpu.memory_space<vmem>>) attributes {dimension_semantics = [#tpu.dimension_semantics<parallel>], iteration_bounds = array<i64: 25>, scalar_prefetch = 0 : i64, scratch_operands = 0 : i64, tpu.core_type = #tpu.core_type<tc>, window_params = [{transform_indices = @transform_0, window_bounds = array<i64: 1024, 147>}, {pipeline_mode = #tpu.pipeline_mode<synchronous>, transform_indices = @transform_1, window_bounds = array<i64: 147, 64>}, {pipeline_mode = #tpu.pipeline_mode<synchronous>, transform_indices = @transform_2, window_bounds = array<i64: 1, 64>}, {pipeline_mode = #tpu.pipeline_mode<synchronous>, transform_indices = @transform_3, window_bounds = array<i64: 1, 64>}, {transform_indices = @transform_4, window_bounds = array<i64: 1024, 64>}]} {
    %c0 = arith.constant 0 : index
    %c0_0 = arith.constant 0 : index
    %0 = vector.load %arg1[%c0, %c0_0] : memref<1024x147xbf16, #tpu.memory_space<vmem>>, vector<1024x147xbf16>
    %c0_1 = arith.constant 0 : index
    %c0_2 = arith.constant 0 : index
    %1 = vector.load %arg2[%c0_1, %c0_2] : memref<147x64xbf16, #tpu.memory_space<vmem>>, vector<147x64xbf16>
    %cst = arith.constant dense<0.000000e+00> : vector<1024x64xf32>
    %2 = tpu.matmul %0, %1, %cst {dimension_numbers = #tpu.dot_dimension_numbers<[1], [0], [0], [1], [0, 0, 1, 1], [], []>} : vector<1024x147xbf16>, vector<147x64xbf16>, vector<1024x64xf32> -> vector<1024x64xf32>
    %c0_3 = arith.constant 0 : index
    %c0_4 = arith.constant 0 : index
    %3 = vector.load %arg3[%c0_3, %c0_4] : memref<1x64xf32, #tpu.memory_space<vmem>>, vector<1x64xf32>
    %4 = vector.broadcast %3 : vector<1x64xf32> to vector<1024x64xf32>
    %5 = arith.mulf %2, %4 : vector<1024x64xf32>
    %c0_5 = arith.constant 0 : index
    %c0_6 = arith.constant 0 : index
    %6 = vector.load %arg4[%c0_5, %c0_6] : memref<1x64xf32, #tpu.memory_space<vmem>>, vector<1x64xf32>
    %7 = vector.broadcast %6 : vector<1x64xf32> to vector<1024x64xf32>
    %8 = arith.addf %5, %7 : vector<1024x64xf32>
    %cst_7 = arith.constant 0.000000e+00 : f32
    %9 = vector.broadcast %cst_7 : f32 to vector<1024x64xf32>
    %10 = arith.maximumf %8, %9 : vector<1024x64xf32>
    %11 = arith.truncf %10 : vector<1024x64xf32> to vector<1024x64xbf16>
    %c0_8 = arith.constant 0 : index
    %c0_9 = arith.constant 0 : index
    %12 = vector.load %arg5[%c0_8, %c0_9] : memref<1024x64xbf16, #tpu.memory_space<vmem>>, vector<1024x64xbf16>
    tpu.vector_store %arg5[%c0_8, %c0_9], %11 {strides = array<i32>} : memref<1024x64xbf16, #tpu.memory_space<vmem>>, vector<1024x64xbf16>,
    return
  }
  func.func @transform_0(%arg0: i32) -> (i32, i32) {
    %c0_i32 = arith.constant 0 : i32
    %c0_i32_0 = arith.constant 0 : i32
    return %arg0, %c0_i32 : i32, i32
  }
  func.func @transform_1(%arg0: i32) -> (i32, i32) {
    %c0_i32 = arith.constant 0 : i32
    %c0_i32_0 = arith.constant 0 : i32
    %c0_i32_1 = arith.constant 0 : i32
    return %c0_i32, %c0_i32_0 : i32, i32
  }
  func.func @transform_2(%arg0: i32) -> (i32, i32) {
    %c0_i32 = arith.constant 0 : i32
    %c0_i32_0 = arith.constant 0 : i32
    %c0_i32_1 = arith.constant 0 : i32
    return %c0_i32, %c0_i32_0 : i32, i32
  }
  func.func @transform_3(%arg0: i32) -> (i32, i32) {
    %c0_i32 = arith.constant 0 : i32
    %c0_i32_0 = arith.constant 0 : i32
    %c0_i32_1 = arith.constant 0 : i32
    return %c0_i32, %c0_i32_0 : i32, i32
  }
  func.func @transform_4(%arg0: i32) -> (i32, i32) {
    %c0_i32 = arith.constant 0 : i32
    %c0_i32_0 = arith.constant 0 : i32
    return %arg0, %c0_i32 : i32, i32
  }
}

</mosaic_0001>

<llo_original>
// kernel: conv_bn.1
$region0: #{conv_bn.1}
  #allocation0 [shape = 'u32[]', space=smem, size = 0x4, offset = 0x4, fixed_abs, tag = 'smem constant byte address 0x4 - core index']
  #allocation1 [shape = 'u32[144,128]{1,0:T(1,128)}', space=vmem, size = 0x12000, scoped, tag = 'internal scratch']
  %s0 = inlined_call_operand.vmem [shape: bf16[25088,147], index: 0, kind: input, shape index: {}]
  %s1 = inlined_call_operand.vmem [shape: bf16[147,64], index: 1, kind: input, shape index: {}]
  %s2 = inlined_call_operand.vmem [shape: f32[1,64], index: 2, kind: input, shape index: {}]
  %s3 = inlined_call_operand.vmem [shape: f32[1,64], index: 3, kind: input, shape index: {}]
  %s4 = inlined_call_operand.hbm [shape: bf16[25088,64], index: 4, kind: output, shape index: {}]
  %s5 = sld [smem:[#allocation0]]
  $region49: #{conv_bn.1} parent=0
    _
  %s7 = ssub.s32 1, %s5
  %s8 = scalar_select 0, %s7, %s5
  $region1: #{conv_bn.1} parent=0
    #allocation2 [shape = 'u8[524288]{0}', space=vmem, size = 0x80000, scoped, tag = 'output window, operand 0']
    #allocation3 [shape = 's32[2]{0}', space=sflag, size = 0x8, scoped, tag = 'scoped memory for conv_bn.1']
    %9 = vsyncpa [#allocation3], 0
    %s10 = scalar_lea.sflag [#allocation3], 1
    %11 = vsyncpa %s10, 0
    loop: start=0, step=1, limit=27
    $region2: #{conv_bn.1} parent=1 // loop_pre_header
      _
    $region3: #{conv_bn.1} parent=1 // loop_header
      %s13 = sphi 0, %s17
      %p14 = scmp.ge.s32.totalorder %s13, 27
      %s23 = sphi 0, %s25
      %s26 = sphi 0, %s23
      %s27 = sphi 0, %s26
      %s43 = sphi 0, %s27
      %s47 = sphi 0, %s47
      %s49 = sphi 0, %s47
      %s50 = sphi 0, %s49
      %s64 = sphi 0, %s50
      %s68 = sphi 0, %s68
      %s70 = sphi 0, %s68
      %s71 = sphi 0, %s70
      %s85 = sphi 0, %s71
      %s89 = sphi 0, %s89
      %s91 = sphi 0, %s89
      %s92 = sphi 0, %s91
      %s106 = sphi 0, %s92
      %s112 = sphi 0, %s114
      %s115 = sphi 0, %s112
      %s116 = sphi 0, %s115
      %s132 = sphi 0, %s116
    $region4: #{conv_bn.1} parent=1 // loop_header_branch
      %16 = sbr.rel (%p14) target = $region8
    $region5: #{conv_bn.1} parent=1 // loop_body
      %s18 = ssub.s32 %s13, 1
      %s19 = ssub.s32 %s13, 2
      %s20 = sadd.s32 %s13, 1
      %s21 = ssub.s32 %s13, %s20
      %p22 = scmp.eq.s32.totalorder %s21, 0
      %s24 = sadd.s32 %s23, 1
      %s25 = scalar_select %p22, %s23, %s24
      %p28 = pneg %p22
      %p29 = scmp.eq.s32.totalorder %s13, 24
      %p30 = por %p28, %p29
      %p31 = scmp.ne.s32.totalorder %s23, %s26
      %p32 = scmp.eq.s32.totalorder %s13, 0
      %p33 = por %p31, %p32
      %p34 = scmp.ne.s32.totalorder %s23, %s26
      %p35 = scmp.eq.s32.totalorder %s18, 24
      %p36 = por %p34, %p35
      %p37 = scmp.ne.s32.totalorder %s26, %s27
      %p38 = scmp.eq.s32.totalorder %s18, 0
      %p39 = por %p37, %p38
      %p40 = scmp.ne.s32.totalorder %s26, %s27
      %p41 = scmp.eq.s32.totalorder %s19, 24
      %p42 = por %p40, %p41
      %p44 = scmp.ne.s32.totalorder %s27, %s43
      %p45 = scmp.eq.s32.totalorder %s19, 0
      %p46 = por %p44, %p45
      %s48 = sadd.s32 %s47, 1
      %p51 = scmp.eq.s32.totalorder %s13, 24
      %p52 = scmp.ne.s32.totalorder %s47, %s49
      %p53 = scmp.eq.s32.totalorder %s13, 0
      %p54 = por %p52, %p53
      %p55 = scmp.ne.s32.totalorder %s47, %s49
      %p56 = scmp.eq.s32.totalorder %s18, 24
      %p57 = por %p55, %p56
      %p58 = scmp.ne.s32.totalorder %s49, %s50
      %p59 = scmp.eq.s32.totalorder %s18, 0
      %p60 = por %p58, %p59
      %p61 = scmp.ne.s32.totalorder %s49, %s50
      %p62 = scmp.eq.s32.totalorder %s19, 24
      %p63 = por %p61, %p62
      %p65 = scmp.ne.s32.totalorder %s50, %s64
      %p66 = scmp.eq.s32.totalorder %s19, 0
      %p67 = por %p65, %p66
      %s69 = sadd.s32 %s68, 1
      %p72 = scmp.eq.s32.totalorder %s13, 24
      %p73 = scmp.ne.s32.totalorder %s68, %s70
      %p74 = scmp.eq.s32.totalorder %s13, 0
      %p75 = por %p73, %p74
      %p76 = scmp.ne.s32.totalorder %s68, %s70
      %p77 = scmp.eq.s32.totalorder %s18, 24
      %p78 = por %p76, %p77
      %p79 = scmp.ne.s32.totalorder %s70, %s71
      %p80 = scmp.eq.s32.totalorder %s18, 0
      %p81 = por %p79, %p80
      %p82 = scmp.ne.s32.totalorder %s70, %s71
      %p83 = scmp.eq.s32.totalorder %s19, 24
      %p84 = por %p82, %p83
      %p86 = scmp.ne.s32.totalorder %s71, %s85
      %p87 = scmp.eq.s32.totalorder %s19, 0
      %p88 = por %p86, %p87
      %s90 = sadd.s32 %s89, 1
      %p93 = scmp.eq.s32.totalorder %s13, 24
      %p94 = scmp.ne.s32.totalorder %s89, %s91
      %p95 = scmp.eq.s32.totalorder %s13, 0
      %p96 = por %p94, %p95
      %p97 = scmp.ne.s32.totalorder %s89, %s91
      %p98 = scmp.eq.s32.totalorder %s18, 24
      %p99 = por %p97, %p98
      %p100 = scmp.ne.s32.totalorder %s91, %s92
      %p101 = scmp.eq.s32.totalorder %s18, 0
      %p102 = por %p100, %p101
      %p103 = scmp.ne.s32.totalorder %s91, %s92
      %p104 = scmp.eq.s32.totalorder %s19, 24
      %p105 = por %p103, %p104
      %p107 = scmp.ne.s32.totalorder %s92, %s106
      %p108 = scmp.eq.s32.totalorder %s19, 0
      %p109 = por %p107, %p108
      %s110 = ssub.s32 %s13, %s20
      %p111 = scmp.eq.s32.totalorder %s110, 0
      %s113 = sadd.s32 %s112, 1
      %s114 = scalar_select %p111, %s112, %s113
      %p117 = pneg %p111
      %p118 = scmp.eq.s32.totalorder %s13, 24
      %p119 = por %p117, %p118
      %p120 = scmp.ne.s32.totalorder %s112, %s115
      %p121 = scmp.eq.s32.totalorder %s13, 0
      %p122 = por %p120, %p121
      %p123 = scmp.ne.s32.totalorder %s112, %s115
      %p124 = scmp.eq.s32.totalorder %s18, 24
      %p125 = por %p123, %p124
      %p126 = scmp.ne.s32.totalorder %s115, %s116
      %p127 = scmp.eq.s32.totalorder %s18, 0
      %p128 = por %p126, %p127
      %p129 = scmp.ne.s32.totalorder %s115, %s116
      %p130 = scmp.eq.s32.totalorder %s19, 24
      %p131 = por %p129, %p130
      %p133 = scmp.ne.s32.totalorder %s116, %s132
      %p134 = scmp.eq.s32.totalorder %s19, 0
      %p135 = por %p133, %p134
      %p136 = scmp.le.s32.totalorder 1, %s13
      %p137 = scmp.lt.s32.totalorder %s13, 26
      %p138 = pnand %p136, %p137
      %p139 = pneg %p138
      // Predicated region
      $region9: #{conv_bn.1} parent=5 // pred_check
        _
      $region10: #{conv_bn.1} parent=5 // pred_check_branch
        %141 = sbr.rel (%p138) target = $region12
      $region11: #{conv_bn.1} parent=5 // pred_region
        %s142 = ssub.s32 %s13, 1
        // Predicated region
        $region13: #{conv_bn.1} parent=11 // pred_check
          %p143 = pneg %p60
        $region14: #{conv_bn.1} parent=11 // pred_check_branch
          %145 = sbr.rel (%p143) target = $region16
        $region15: #{conv_bn.1} parent=11 // pred_region
          _
        $region16: #{conv_bn.1} parent=11 // pred_fallthru
          _
        // Predicated region
        $region17: #{conv_bn.1} parent=11 // pred_check
          %p146 = pneg %p81
        $region18: #{conv_bn.1} parent=11 // pred_check_branch
          %148 = sbr.rel (%p146) target = $region20
        $region19: #{conv_bn.1} parent=11 // pred_region
          _
        $region20: #{conv_bn.1} parent=11 // pred_fallthru
          _
        // Predicated region
        $region21: #{conv_bn.1} parent=11 // pred_check
          %p149 = pneg %p102
        $region22: #{conv_bn.1} parent=11 // pred_check_branch
          %151 = sbr.rel (%p149) target = $region24
        $region23: #{conv_bn.1} parent=11 // pred_region
          _
        $region24: #{conv_bn.1} parent=11 // pred_fallthru
          _
      $region12: #{conv_bn.1} parent=5 // pred_fallthru
        _
      %p152 = scmp.lt.s32.totalorder %s13, 25
      // Predicated region
      $region25: #{conv_bn.1} parent=5 // pred_check
        %p153 = pneg %p152
      $region26: #{conv_bn.1} parent=5 // pred_check_branch
        %155 = sbr.rel (%p153) target = $region28
      $region27: #{conv_bn.1} parent=5 // pred_region
        // Predicated region
        $region29: #{conv_bn.1} parent=27 // pred_check
          %p156 = pneg %p33
        $region30: #{conv_bn.1} parent=27 // pred_check_branch
          %158 = sbr.rel (%p156) target = $region32
        $region31: #{conv_bn.1} parent=27 // pred_region
          %s159 = smul.u32 128, %s13
          %s160 = ssub.s32 3136, %s159
          %p161 = scmp.lt.s32.totalorder %s160, 128
          %s162 = scalar_select %p161, %s160, 128
          %s163 = smul.u32 64, %s162
          %s164 = smul.u32 %s163, 2
          %p165 = scmp.lt.s32.totalorder %s159, 3135
          %s166 = scalar_select %p165, %s159, 3135
          %s167 = smul.addr %s166, 2
          %s168 = smul.addr %s167, 4
          %s169 = scalar_lea.vmem %s0, %s168
          %s170 = smul.u32 128, %s13
          %s171 = ssub.s32 3136, %s170
          %p172 = scmp.lt.s32.totalorder %s171, 128
          %s173 = scalar_select %p172, %s171, 128
          %s174 = smul.u32 64, %s173
          %s175 = smul.u32 %s174, 2
        $region32: #{conv_bn.1} parent=27 // pred_fallthru
          _
      $region28: #{conv_bn.1} parent=5 // pred_fallthru
        _
      %p176 = scmp.le.s32.totalorder 1, %s13
      %p177 = scmp.lt.s32.totalorder %s13, 26
      %p178 = pnand %p176, %p177
      %p179 = pneg %p178
      // Predicated region
      $region33: #{conv_bn.1} parent=5 // pred_check
        _
      $region34: #{conv_bn.1} parent=5 // pred_check_branch
        %181 = sbr.rel (%p178) target = $region36
      $region35: #{conv_bn.1} parent=5 // pred_region
        %s182 = ssub.s32 %s13, 1
        %s183 = smul.u32 128, %s18
        %s184 = ssub.s32 3136, %s183
        %p185 = scmp.lt.s32.totalorder %s184, 128
        %s186 = scalar_select %p185, %s184, 128
        %s187 = smul.u32 64, %s186
        %s188 = smul.u32 %s187, 2
        %p189 = scmp.lt.s32.totalorder %s183, 3135
        %s190 = scalar_select %p189, %s183, 3135
        %s191 = smul.addr %s190, 2
        %s192 = smul.addr %s191, 4
        %s193 = scalar_lea.vmem %s0, %s192
        %p194 = pneg %p39
        %p195 = pneg %p36
        %p196 = pneg %p60
        %p197 = pneg %p57
        %p198 = pneg %p81
        %p199 = pneg %p78
        %p200 = pneg %p102
        %p201 = pneg %p99
        %p202 = pneg %p128
        %p203 = pneg %p125
        %s204 = sand.u32 %s115, 1
        %s205 = scalar_lea.sflag [#allocation3], %s204
        %s206 = sand.u32 %s115, 1
        %s207 = smul.addr %s206, 512
        %s208 = scalar_lea.vmem [#allocation2], %s207
        %s209 = smul.u32 128, %s18
        %s210 = ssub.s32 3136, %s209
        %p211 = scmp.lt.s32.totalorder %s210, 128
        %s212 = scalar_select %p211, %s210, 128
        %s213 = smul.u32 64, %s212
        %s214 = smul.u32 %s213, 2
        %p215 = scmp.lt.s32.totalorder %s209, 3135
        %s216 = scalar_select %p215, %s209, 3135
        %s217 = smul.addr %s216, 2
        %s218 = smul.addr %s217, 4
        %s219 = scalar_lea.vmem %s0, %s218
        %s220 = smul.u32 128, %s18
        %s221 = ssub.s32 3136, %s220
        %p222 = scmp.lt.s32.totalorder %s221, 128
        %s223 = scalar_select %p222, %s221, 128
        %s224 = smul.u32 64, %s223
        %s225 = smul.u32 %s224, 2
        %s226 = smul.u32 128, %s18
        %s227 = ssub.s32 3136, %s226
        %p228 = scmp.lt.s32.totalorder %s227, 128
        %s229 = scalar_select %p228, %s227, 128
        %s230 = smul.u32 64, %s229
        %v232 = vld [vmem:[%s219] sm:$0xff]
        %v233 = vld [vmem:[%s219 + $0x8] sm:$0xff]
        %v234 = vld [vmem:[%s219 + $0x10] sm:$0xff]
        %v235 = vld [vmem:[%s219 + $0x18] sm:$0xff]
        %v236 = vld [vmem:[%s219 + $0x20] sm:$0xff]
        %v237 = vld [vmem:[%s219 + $0x28] sm:$0xff]
        %v238 = vld [vmem:[%s219 + $0x30] sm:$0xff]
        %v239 = vld [vmem:[%s219 + $0x38] sm:$0xff]
        %v240 = vld [vmem:[%s219 + $0x40] sm:$0xff]
        %v241 = vld [vmem:[%s219 + $0x48] sm:$0xff]
        %v242 = vld [vmem:[%s219 + $0x50] sm:$0xff]
        %v243 = vld [vmem:[%s219 + $0x58] sm:$0xff]
        %v244 = vld [vmem:[%s219 + $0x60] sm:$0xff]
        %v245 = vld [vmem:[%s219 + $0x68] sm:$0xff]
        %v246 = vld [vmem:[%s219 + $0x70] sm:$0xff]
        %v247 = vld [vmem:[%s219 + $0x78] sm:$0xff]
        %v248 = vld [vmem:[%s219 + $0x80] sm:$0xff]
        %v249 = vld [vmem:[%s219 + $0x88] sm:$0xff]
        %v250 = vld [vmem:[%s219 + $0x90] sm:$0xff]
        %v251 = vld [vmem:[%s219 + $0x98] sm:$0xff]
        %v252 = vld [vmem:[%s219 + $0xa0] sm:$0xff]
        %v253 = vld [vmem:[%s219 + $0xa8] sm:$0xff]
        %v254 = vld [vmem:[%s219 + $0xb0] sm:$0xff]
        %v255 = vld [vmem:[%s219 + $0xb8] sm:$0xff]
        %v256 = vld [vmem:[%s219 + $0xc0] sm:$0xff]
        %v257 = vld [vmem:[%s219 + $0xc8] sm:$0xff]
        %v258 = vld [vmem:[%s219 + $0xd0] sm:$0xff]
        %v259 = vld [vmem:[%s219 + $0xd8] sm:$0xff]
        %v260 = vld [vmem:[%s219 + $0xe0] sm:$0xff]
        %v261 = vld [vmem:[%s219 + $0xe8] sm:$0xff]
        %v262 = vld [vmem:[%s219 + $0xf0] sm:$0xff]
        %v263 = vld [vmem:[%s219 + $0xf8] sm:$0xff]
        %v264 = vld [vmem:[%s219 + $0x100] sm:$0xff]
        %v265 = vld [vmem:[%s219 + $0x108] sm:$0xff]
        %v266 = vld [vmem:[%s219 + $0x110] sm:$0xff]
        %v267 = vld [vmem:[%s219 + $0x118] sm:$0xff]
        %v268 = vld [vmem:[%s219 + $0x120] sm:$0xff]
        %v269 = vld [vmem:[%s219 + $0x128] sm:$0xff]
        %v270 = vld [vmem:[%s219 + $0x130] sm:$0xff]
        %v271 = vld [vmem:[%s219 + $0x138] sm:$0xff]
        %v272 = vld [vmem:[%s219 + $0x140] sm:$0xff]
        %v273 = vld [vmem:[%s219 + $0x148] sm:$0xff]
        %v274 = vld [vmem:[%s219 + $0x150] sm:$0xff]
        %v275 = vld [vmem:[%s219 + $0x158] sm:$0xff]
        %v276 = vld [vmem:[%s219 + $0x160] sm:$0xff]
        %v277 = vld [vmem:[%s219 + $0x168] sm:$0xff]
        %v278 = vld [vmem:[%s219 + $0x170] sm:$0xff]
        %v279 = vld [vmem:[%s219 + $0x178] sm:$0xff]
        %v280 = vld [vmem:[%s219 + $0x180] sm:$0xff]
        %v281 = vld [vmem:[%s219 + $0x188] sm:$0xff]
        %v282 = vld [vmem:[%s219 + $0x190] sm:$0xff]
        %v283 = vld [vmem:[%s219 + $0x198] sm:$0xff]
        %v284 = vld [vmem:[%s219 + $0x1a0] sm:$0xff]
        %v285 = vld [vmem:[%s219 + $0x1a8] sm:$0xff]
        %v286 = vld [vmem:[%s219 + $0x1b0] sm:$0xff]
        %v287 = vld [vmem:[%s219 + $0x1b8] sm:$0xff]
        %v288 = vld [vmem:[%s219 + $0x1c0] sm:$0xff]
        %v289 = vld [vmem:[%s219 + $0x1c8] sm:$0xff]
        %v290 = vld [vmem:[%s219 + $0x1d0] sm:$0xff]
        %v291 = vld [vmem:[%s219 + $0x1d8] sm:$0xff]
        %v292 = vld [vmem:[%s219 + $0x1e0] sm:$0xff]
        %v293 = vld [vmem:[%s219 + $0x1e8] sm:$0xff]
        %v294 = vld [vmem:[%s219 + $0x1f0] sm:$0xff]
        %v295 = vld [vmem:[%s219 + $0x1f8] sm:$0xff]
        %v296 = vld [vmem:[%s219 + $0x200] sm:$0xff]
        %v297 = vld [vmem:[%s219 + $0x208] sm:$0xff]
        %v298 = vld [vmem:[%s219 + $0x210] sm:$0xff]
        %v299 = vld [vmem:[%s219 + $0x218] sm:$0xff]
        %v300 = vld [vmem:[%s219 + $0x220] sm:$0xff]
        %v301 = vld [vmem:[%s219 + $0x228] sm:$0xff]
        %v302 = vld [vmem:[%s219 + $0x230] sm:$0xff]
        %v303 = vld [vmem:[%s219 + $0x238] sm:$0xff]
        %v304 = vld [vmem:[%s219 + $0x240] sm:$0xff]
        %v305 = vld [vmem:[%s219 + $0x248] sm:$0xff]
        %v306 = vld [vmem:[%s219 + $0x250] sm:$0xff]
        %v307 = vld [vmem:[%s219 + $0x258] sm:$0xff]
        %v308 = vld [vmem:[%s219 + $0x260] sm:$0xff]
        %v309 = vld [vmem:[%s219 + $0x268] sm:$0xff]
        %v310 = vld [vmem:[%s219 + $0x270] sm:$0xff]
        %v311 = vld [vmem:[%s219 + $0x278] sm:$0xff]
        %v312 = vld [vmem:[%s219 + $0x280] sm:$0xff]
        %v313 = vld [vmem:[%s219 + $0x288] sm:$0xff]
        %v314 = vld [vmem:[%s219 + $0x290] sm:$0xff]
        %v315 = vld [vmem:[%s219 + $0x298] sm:$0xff]
        %v316 = vld [vmem:[%s219 + $0x2a0] sm:$0xff]
        %v317 = vld [vmem:[%s219 + $0x2a8] sm:$0xff]
        %v318 = vld [vmem:[%s219 + $0x2b0] sm:$0xff]
        %v319 = vld [vmem:[%s219 + $0x2b8] sm:$0xff]
        %v320 = vld [vmem:[%s219 + $0x2c0] sm:$0xff]
        %v321 = vld [vmem:[%s219 + $0x2c8] sm:$0xff]
        %v322 = vld [vmem:[%s219 + $0x2d0] sm:$0xff]
        %v323 = vld [vmem:[%s219 + $0x2d8] sm:$0xff]
        %v324 = vld [vmem:[%s219 + $0x2e0] sm:$0xff]
        %v325 = vld [vmem:[%s219 + $0x2e8] sm:$0xff]
        %v326 = vld [vmem:[%s219 + $0x2f0] sm:$0xff]
        %v327 = vld [vmem:[%s219 + $0x2f8] sm:$0xff]
        %v328 = vld [vmem:[%s219 + $0x300] sm:$0xff]
        %v329 = vld [vmem:[%s219 + $0x308] sm:$0xff]
        %v330 = vld [vmem:[%s219 + $0x310] sm:$0xff]
        %v331 = vld [vmem:[%s219 + $0x318] sm:$0xff]
        %v332 = vld [vmem:[%s219 + $0x320] sm:$0xff]
        %v333 = vld [vmem:[%s219 + $0x328] sm:$0xff]
        %v334 = vld [vmem:[%s219 + $0x330] sm:$0xff]
        %v335 = vld [vmem:[%s219 + $0x338] sm:$0xff]
        %v336 = vld [vmem:[%s219 + $0x340] sm:$0xff]
        %v337 = vld [vmem:[%s219 + $0x348] sm:$0xff]
        %v338 = vld [vmem:[%s219 + $0x350] sm:$0xff]
        %v339 = vld [vmem:[%s219 + $0x358] sm:$0xff]
        %v340 = vld [vmem:[%s219 + $0x360] sm:$0xff]
        %v341 = vld [vmem:[%s219 + $0x368] sm:$0xff]
        %v342 = vld [vmem:[%s219 + $0x370] sm:$0xff]
        %v343 = vld [vmem:[%s219 + $0x378] sm:$0xff]
        %v344 = vld [vmem:[%s219 + $0x380] sm:$0xff]
        %v345 = vld [vmem:[%s219 + $0x388] sm:$0xff]
        %v346 = vld [vmem:[%s219 + $0x390] sm:$0xff]
        %v347 = vld [vmem:[%s219 + $0x398] sm:$0xff]
        %v348 = vld [vmem:[%s219 + $0x3a0] sm:$0xff]
        %v349 = vld [vmem:[%s219 + $0x3a8] sm:$0xff]
        %v350 = vld [vmem:[%s219 + $0x3b0] sm:$0xff]
        %v351 = vld [vmem:[%s219 + $0x3b8] sm:$0xff]
        %v352 = vld [vmem:[%s219 + $0x3c0] sm:$0xff]
        %v353 = vld [vmem:[%s219 + $0x3c8] sm:$0xff]
        %v354 = vld [vmem:[%s219 + $0x3d0] sm:$0xff]
        %v355 = vld [vmem:[%s219 + $0x3d8] sm:$0xff]
        %v356 = vld [vmem:[%s219 + $0x3e0] sm:$0xff]
        %v357 = vld [vmem:[%s219 + $0x3e8] sm:$0xff]
        %v358 = vld [vmem:[%s219 + $0x3f0] sm:$0xff]
        %v359 = vld [vmem:[%s219 + $0x3f8] sm:$0xff]
        %v360 = vld [vmem:[%s1] sm:$0xf]
        %v361 = vld [vmem:[%s1 + $0x4] sm:$0xf]
        %v362 = vld [vmem:[%s1 + $0x8] sm:$0xf]
        %v363 = vld [vmem:[%s1 + $0xc] sm:$0xf]
        %v364 = vld [vmem:[%s1 + $0x10] sm:$0xf]
        %v365 = vld [vmem:[%s1 + $0x14] sm:$0xf]
        %v366 = vld [vmem:[%s1 + $0x18] sm:$0xf]
        %v367 = vld [vmem:[%s1 + $0x1c] sm:$0xf]
        %v368 = vld [vmem:[%s1 + $0x20] sm:$0xf]
        %v369 = vld [vmem:[%s1 + $0x24] sm:$0xf]
        %v370 = vld [vmem:[%s1 + $0x28] sm:$0xf]
        %v371 = vld [vmem:[%s1 + $0x2c] sm:$0xf]
        %v372 = vld [vmem:[%s1 + $0x30] sm:$0xf]
        %v373 = vld [vmem:[%s1 + $0x34] sm:$0xf]
        %v374 = vld [vmem:[%s1 + $0x38] sm:$0xf]
        %v375 = vld [vmem:[%s1 + $0x3c] sm:$0xf]
        %v376 = vld [vmem:[%s1 + $0x40] sm:$0xf]
        %v377 = vld [vmem:[%s1 + $0x44] sm:$0xf]
        %v378 = vld [vmem:[%s1 + $0x48] sm:$0x3]
        %v507 = vunpack.c.l.b16 %v232
        %v508 = vunpack.c.h.b16 %v232
        %v509 = vunpack.c.l.b16 %v233
        %v510 = vunpack.c.h.b16 %v233
        %v511 = vunpack.c.l.b16 %v234
        %v512 = vunpack.c.h.b16 %v234
        %v513 = vunpack.c.l.b16 %v235
        %v514 = vunpack.c.h.b16 %v235
        %v515 = vunpack.c.l.b16 %v236
        %v516 = vunpack.c.h.b16 %v236
        %v517 = vunpack.c.l.b16 %v237
        %v518 = vunpack.c.h.b16 %v237
        %v519 = vunpack.c.l.b16 %v238
        %v520 = vunpack.c.h.b16 %v238
        %v521 = vunpack.c.l.b16 %v239
        %v522 = vunpack.c.h.b16 %v239
        %v523 = vunpack.c.l.b16 %v240
        %v524 = vunpack.c.h.b16 %v240
        %v525 = vunpack.c.l.b16 %v241
        %v526 = vunpack.c.h.b16 %v241
        %v527 = vunpack.c.l.b16 %v242
        %v528 = vunpack.c.h.b16 %v242
        %v529 = vunpack.c.l.b16 %v243
        %v530 = vunpack.c.h.b16 %v243
        %v531 = vunpack.c.l.b16 %v244
        %v532 = vunpack.c.h.b16 %v244
        %v533 = vunpack.c.l.b16 %v245
        %v534 = vunpack.c.h.b16 %v245
        %v535 = vunpack.c.l.b16 %v246
        %v536 = vunpack.c.h.b16 %v246
        %v537 = vunpack.c.l.b16 %v247
        %v538 = vunpack.c.h.b16 %v247
        %v539 = vunpack.c.l.b16 %v248
        %v540 = vunpack.c.h.b16 %v248
        %v541 = vunpack.c.l.b16 %v249
        %v542 = vunpack.c.h.b16 %v249
        %v543 = vunpack.c.l.b16 %v250
        %v544 = vunpack.c.h.b16 %v250
        %v545 = vunpack.c.l.b16 %v251
        %v546 = vunpack.c.h.b16 %v251
        %v547 = vunpack.c.l.b16 %v252
        %v548 = vunpack.c.h.b16 %v252
        %v549 = vunpack.c.l.b16 %v253
        %v550 = vunpack.c.h.b16 %v253
        %v551 = vunpack.c.l.b16 %v254
        %v552 = vunpack.c.h.b16 %v254
        %v553 = vunpack.c.l.b16 %v255
        %v554 = vunpack.c.h.b16 %v255
        %v555 = vunpack.c.l.b16 %v256
        %v556 = vunpack.c.h.b16 %v256
        %v557 = vunpack.c.l.b16 %v257
        %v558 = vunpack.c.h.b16 %v257
        %v559 = vunpack.c.l.b16 %v258
        %v560 = vunpack.c.h.b16 %v258
        %v561 = vunpack.c.l.b16 %v259
        %v562 = vunpack.c.h.b16 %v259
        %v563 = vunpack.c.l.b16 %v260
        %v564 = vunpack.c.h.b16 %v260
        %v565 = vunpack.c.l.b16 %v261
        %v566 = vunpack.c.h.b16 %v261
        %v567 = vunpack.c.l.b16 %v262
        %v568 = vunpack.c.h.b16 %v262
        %v569 = vunpack.c.l.b16 %v263
        %v570 = vunpack.c.h.b16 %v263
        %v571 = vunpack.c.l.b16 %v264
        %v572 = vunpack.c.h.b16 %v264
        %v573 = vunpack.c.l.b16 %v265
        %v574 = vunpack.c.h.b16 %v265
        %v575 = vunpack.c.l.b16 %v266
        %v576 = vunpack.c.h.b16 %v266
        %v577 = vunpack.c.l.b16 %v267
        %v578 = vunpack.c.h.b16 %v267
        %v579 = vunpack.c.l.b16 %v268
        %v580 = vunpack.c.h.b16 %v268
        %v581 = vunpack.c.l.b16 %v269
        %v582 = vunpack.c.h.b16 %v269
        %v583 = vunpack.c.l.b16 %v270
        %v584 = vunpack.c.h.b16 %v270
        %v585 = vunpack.c.l.b16 %v271
        %v586 = vunpack.c.h.b16 %v271
        %v587 = vunpack.c.l.b16 %v272
        %v588 = vunpack.c.h.b16 %v272
        %v589 = vunpack.c.l.b16 %v273
        %v590 = vunpack.c.h.b16 %v273
        %v591 = vunpack.c.l.b16 %v274
        %v592 = vunpack.c.h.b16 %v274
        %v593 = vunpack.c.l.b16 %v275
        %v594 = vunpack.c.h.b16 %v275
        %v595 = vunpack.c.l.b16 %v276
        %v596 = vunpack.c.h.b16 %v276
        %v597 = vunpack.c.l.b16 %v277
        %v598 = vunpack.c.h.b16 %v277
        %v599 = vunpack.c.l.b16 %v278
        %v600 = vunpack.c.h.b16 %v278
        %v601 = vunpack.c.l.b16 %v279
        %v602 = vunpack.c.h.b16 %v279
        %v603 = vunpack.c.l.b16 %v280
        %v604 = vunpack.c.h.b16 %v280
        %v605 = vunpack.c.l.b16 %v281
        %v606 = vunpack.c.h.b16 %v281
        %v607 = vunpack.c.l.b16 %v282
        %v608 = vunpack.c.h.b16 %v282
        %v609 = vunpack.c.l.b16 %v283
        %v610 = vunpack.c.h.b16 %v283
        %v611 = vunpack.c.l.b16 %v284
        %v612 = vunpack.c.h.b16 %v284
        %v613 = vunpack.c.l.b16 %v285
        %v614 = vunpack.c.h.b16 %v285
        %v615 = vunpack.c.l.b16 %v286
        %v616 = vunpack.c.h.b16 %v286
        %v617 = vunpack.c.l.b16 %v287
        %v618 = vunpack.c.h.b16 %v287
        %v619 = vunpack.c.l.b16 %v288
        %v620 = vunpack.c.h.b16 %v288
        %v621 = vunpack.c.l.b16 %v289
        %v622 = vunpack.c.h.b16 %v289
        %v623 = vunpack.c.l.b16 %v290
        %v624 = vunpack.c.h.b16 %v290
        %v625 = vunpack.c.l.b16 %v291
        %v626 = vunpack.c.h.b16 %v291
        %v627 = vunpack.c.l.b16 %v292
        %v628 = vunpack.c.h.b16 %v292
        %v629 = vunpack.c.l.b16 %v293
        %v630 = vunpack.c.h.b16 %v293
        %v631 = vunpack.c.l.b16 %v294
        %v632 = vunpack.c.h.b16 %v294
        %v633 = vunpack.c.l.b16 %v295
        %v634 = vunpack.c.h.b16 %v295
        %v635 = vunpack.c.l.b16 %v296
        %v636 = vunpack.c.h.b16 %v296
        %v637 = vunpack.c.l.b16 %v297
        %v638 = vunpack.c.h.b16 %v297
        %v639 = vunpack.c.l.b16 %v298
        %v640 = vunpack.c.h.b16 %v298
        %v641 = vunpack.c.l.b16 %v299
        %v642 = vunpack.c.h.b16 %v299
        %v643 = vunpack.c.l.b16 %v300
        %v644 = vunpack.c.h.b16 %v300
        %v645 = vunpack.c.l.b16 %v301
        %v646 = vunpack.c.h.b16 %v301
        %v647 = vunpack.c.l.b16 %v302
        %v648 = vunpack.c.h.b16 %v302
        %v649 = vunpack.c.l.b16 %v303
        %v650 = vunpack.c.h.b16 %v303
        %v651 = vunpack.c.l.b16 %v304
        %v652 = vunpack.c.h.b16 %v304
        %v653 = vunpack.c.l.b16 %v305
        %v654 = vunpack.c.h.b16 %v305
        %v655 = vunpack.c.l.b16 %v306
        %v656 = vunpack.c.h.b16 %v306
        %v657 = vunpack.c.l.b16 %v307
        %v658 = vunpack.c.h.b16 %v307
        %v659 = vunpack.c.l.b16 %v308
        %v660 = vunpack.c.h.b16 %v308
        %v661 = vunpack.c.l.b16 %v309
        %v662 = vunpack.c.h.b16 %v309
        %v663 = vunpack.c.l.b16 %v310
        %v664 = vunpack.c.h.b16 %v310
        %v665 = vunpack.c.l.b16 %v311
        %v666 = vunpack.c.h.b16 %v311
        %v667 = vunpack.c.l.b16 %v312
        %v668 = vunpack.c.h.b16 %v312
        %v669 = vunpack.c.l.b16 %v313
        %v670 = vunpack.c.h.b16 %v313
        %v671 = vunpack.c.l.b16 %v314
        %v672 = vunpack.c.h.b16 %v314
        %v673 = vunpack.c.l.b16 %v315
        %v674 = vunpack.c.h.b16 %v315
        %v675 = vunpack.c.l.b16 %v316
        %v676 = vunpack.c.h.b16 %v316
        %v677 = vunpack.c.l.b16 %v317
        %v678 = vunpack.c.h.b16 %v317
        %v679 = vunpack.c.l.b16 %v318
        %v680 = vunpack.c.h.b16 %v318
        %v681 = vunpack.c.l.b16 %v319
        %v682 = vunpack.c.h.b16 %v319
        %v683 = vunpack.c.l.b16 %v320
        %v684 = vunpack.c.h.b16 %v320
        %v685 = vunpack.c.l.b16 %v321
        %v686 = vunpack.c.h.b16 %v321
        %v687 = vunpack.c.l.b16 %v322
        %v688 = vunpack.c.h.b16 %v322
        %v689 = vunpack.c.l.b16 %v323
        %v690 = vunpack.c.h.b16 %v323
        %v691 = vunpack.c.l.b16 %v324
        %v692 = vunpack.c.h.b16 %v324
        %v693 = vunpack.c.l.b16 %v325
        %v694 = vunpack.c.h.b16 %v325
        %v695 = vunpack.c.l.b16 %v326
        %v696 = vunpack.c.h.b16 %v326
        %v697 = vunpack.c.l.b16 %v327
        %v698 = vunpack.c.h.b16 %v327
        %v699 = vunpack.c.l.b16 %v328
        %v700 = vunpack.c.h.b16 %v328
        %v701 = vunpack.c.l.b16 %v329
        %v702 = vunpack.c.h.b16 %v329
        %v703 = vunpack.c.l.b16 %v330
        %v704 = vunpack.c.h.b16 %v330
        %v705 = vunpack.c.l.b16 %v331
        %v706 = vunpack.c.h.b16 %v331
        %v707 = vunpack.c.l.b16 %v332
        %v708 = vunpack.c.h.b16 %v332
        %v709 = vunpack.c.l.b16 %v333
        %v710 = vunpack.c.h.b16 %v333
        %v711 = vunpack.c.l.b16 %v334
        %v712 = vunpack.c.h.b16 %v334
        %v713 = vunpack.c.l.b16 %v335
        %v714 = vunpack.c.h.b16 %v335
        %v715 = vunpack.c.l.b16 %v336
        %v716 = vunpack.c.h.b16 %v336
        %v717 = vunpack.c.l.b16 %v337
        %v718 = vunpack.c.h.b16 %v337
        %v719 = vunpack.c.l.b16 %v338
        %v720 = vunpack.c.h.b16 %v338
        %v721 = vunpack.c.l.b16 %v339
        %v722 = vunpack.c.h.b16 %v339
        %v723 = vunpack.c.l.b16 %v340
        %v724 = vunpack.c.h.b16 %v340
        %v725 = vunpack.c.l.b16 %v341
        %v726 = vunpack.c.h.b16 %v341
        %v727 = vunpack.c.l.b16 %v342
        %v728 = vunpack.c.h.b16 %v342
        %v729 = vunpack.c.l.b16 %v343
        %v730 = vunpack.c.h.b16 %v343
        %v731 = vunpack.c.l.b16 %v344
        %v732 = vunpack.c.h.b16 %v344
        %v733 = vunpack.c.l.b16 %v345
        %v734 = vunpack.c.h.b16 %v345
        %v735 = vunpack.c.l.b16 %v346
        %v736 = vunpack.c.h.b16 %v346
        %v737 = vunpack.c.l.b16 %v347
        %v738 = vunpack.c.h.b16 %v347
        %v739 = vunpack.c.l.b16 %v348
        %v740 = vunpack.c.h.b16 %v348
        %v741 = vunpack.c.l.b16 %v349
        %v742 = vunpack.c.h.b16 %v349
        %v743 = vunpack.c.l.b16 %v350
        %v744 = vunpack.c.h.b16 %v350
        %v745 = vunpack.c.l.b16 %v351
        %v746 = vunpack.c.h.b16 %v351
        %v747 = vunpack.c.l.b16 %v352
        %v748 = vunpack.c.h.b16 %v352
        %v749 = vunpack.c.l.b16 %v353
        %v750 = vunpack.c.h.b16 %v353
        %v751 = vunpack.c.l.b16 %v354
        %v752 = vunpack.c.h.b16 %v354
        %v753 = vunpack.c.l.b16 %v355
        %v754 = vunpack.c.h.b16 %v355
        %v755 = vunpack.c.l.b16 %v356
        %v756 = vunpack.c.h.b16 %v356
        %v757 = vunpack.c.l.b16 %v357
        %v758 = vunpack.c.h.b16 %v357
        %v759 = vunpack.c.l.b16 %v358
        %v760 = vunpack.c.h.b16 %v358
        %v761 = vunpack.c.l.b16 %v359
        %v762 = vunpack.c.h.b16 %v359
        %v763 = vpack.c.b16 %v509, %v507
        %v764 = vpack.c.b16 %v510, %v508
        %v765 = vpack.c.b16 %v513, %v511
        %v766 = vpack.c.b16 %v514, %v512
        %v767 = vpack.c.b16 %v517, %v515
        %v768 = vpack.c.b16 %v518, %v516
        %v769 = vpack.c.b16 %v521, %v519
        %v770 = vpack.c.b16 %v522, %v520
        %v771 = vpack.c.b16 %v525, %v523
        %v772 = vpack.c.b16 %v526, %v524
        %v773 = vpack.c.b16 %v529, %v527
        %v774 = vpack.c.b16 %v530, %v528
        %v775 = vpack.c.b16 %v533, %v531
        %v776 = vpack.c.b16 %v534, %v532
        %v777 = vpack.c.b16 %v537, %v535
        %v778 = vpack.c.b16 %v538, %v536
        %v779 = vpack.c.b16 %v541, %v539
        %v780 = vpack.c.b16 %v542, %v540
        %v781 = vpack.c.b16 %v545, %v543
        %v782 = vpack.c.b16 %v546, %v544
        %v783 = vpack.c.b16 %v549, %v547
        %v784 = vpack.c.b16 %v550, %v548
        %v785 = vpack.c.b16 %v553, %v551
        %v786 = vpack.c.b16 %v554, %v552
        %v787 = vpack.c.b16 %v557, %v555
        %v788 = vpack.c.b16 %v558, %v556
        %v789 = vpack.c.b16 %v561, %v559
        %v790 = vpack.c.b16 %v562, %v560
        %v791 = vpack.c.b16 %v565, %v563
        %v792 = vpack.c.b16 %v566, %v564
        %v793 = vpack.c.b16 %v569, %v567
        %v794 = vpack.c.b16 %v570, %v568
        %v795 = vpack.c.b16 %v573, %v571
        %v796 = vpack.c.b16 %v574, %v572
        %v797 = vpack.c.b16 %v577, %v575
        %v798 = vpack.c.b16 %v578, %v576
        %v799 = vpack.c.b16 %v581, %v579
        %v800 = vpack.c.b16 %v582, %v580
        %v801 = vpack.c.b16 %v585, %v583
        %v802 = vpack.c.b16 %v586, %v584
        %v803 = vpack.c.b16 %v589, %v587
        %v804 = vpack.c.b16 %v590, %v588
        %v805 = vpack.c.b16 %v593, %v591
        %v806 = vpack.c.b16 %v594, %v592
        %v807 = vpack.c.b16 %v597, %v595
        %v808 = vpack.c.b16 %v598, %v596
        %v809 = vpack.c.b16 %v601, %v599
        %v810 = vpack.c.b16 %v602, %v600
        %v811 = vpack.c.b16 %v605, %v603
        %v812 = vpack.c.b16 %v606, %v604
        %v813 = vpack.c.b16 %v609, %v607
        %v814 = vpack.c.b16 %v610, %v608
        %v815 = vpack.c.b16 %v613, %v611
        %v816 = vpack.c.b16 %v614, %v612
        %v817 = vpack.c.b16 %v617, %v615
        %v818 = vpack.c.b16 %v618, %v616
        %v819 = vpack.c.b16 %v621, %v619
        %v820 = vpack.c.b16 %v622, %v620
        %v821 = vpack.c.b16 %v625, %v623
        %v822 = vpack.c.b16 %v626, %v624
        %v823 = vpack.c.b16 %v629, %v627
        %v824 = vpack.c.b16 %v630, %v628
        %v825 = vpack.c.b16 %v633, %v631
        %v826 = vpack.c.b16 %v634, %v632
        %v827 = vpack.c.b16 %v637, %v635
        %v828 = vpack.c.b16 %v638, %v636
        %v829 = vpack.c.b16 %v641, %v639
        %v830 = vpack.c.b16 %v642, %v640
        %v831 = vpack.c.b16 %v645, %v643
        %v832 = vpack.c.b16 %v646, %v644
        %v833 = vpack.c.b16 %v649, %v647
        %v834 = vpack.c.b16 %v650, %v648
        %v835 = vpack.c.b16 %v653, %v651
        %v836 = vpack.c.b16 %v654, %v652
        %v837 = vpack.c.b16 %v657, %v655
        %v838 = vpack.c.b16 %v658, %v656
        %v839 = vpack.c.b16 %v661, %v659
        %v840 = vpack.c.b16 %v662, %v660
        %v841 = vpack.c.b16 %v665, %v663
        %v842 = vpack.c.b16 %v666, %v664
        %v843 = vpack.c.b16 %v669, %v667
        %v844 = vpack.c.b16 %v670, %v668
        %v845 = vpack.c.b16 %v673, %v671
        %v846 = vpack.c.b16 %v674, %v672
        %v847 = vpack.c.b16 %v677, %v675
        %v848 = vpack.c.b16 %v678, %v676
        %v849 = vpack.c.b16 %v681, %v679
        %v850 = vpack.c.b16 %v682, %v680
        %v851 = vpack.c.b16 %v685, %v683
        %v852 = vpack.c.b16 %v686, %v684
        %v853 = vpack.c.b16 %v689, %v687
        %v854 = vpack.c.b16 %v690, %v688
        %v855 = vpack.c.b16 %v693, %v691
        %v856 = vpack.c.b16 %v694, %v692
        %v857 = vpack.c.b16 %v697, %v695
        %v858 = vpack.c.b16 %v698, %v696
        %v859 = vpack.c.b16 %v701, %v699
        %v860 = vpack.c.b16 %v702, %v700
        %v861 = vpack.c.b16 %v705, %v703
        %v862 = vpack.c.b16 %v706, %v704
        %v863 = vpack.c.b16 %v709, %v707
        %v864 = vpack.c.b16 %v710, %v708
        %v865 = vpack.c.b16 %v713, %v711
        %v866 = vpack.c.b16 %v714, %v712
        %v867 = vpack.c.b16 %v717, %v715
        %v868 = vpack.c.b16 %v718, %v716
        %v869 = vpack.c.b16 %v721, %v719
        %v870 = vpack.c.b16 %v722, %v720
        %v871 = vpack.c.b16 %v725, %v723
        %v872 = vpack.c.b16 %v726, %v724
        %v873 = vpack.c.b16 %v729, %v727
        %v874 = vpack.c.b16 %v730, %v728
        %v875 = vpack.c.b16 %v733, %v731
        %v876 = vpack.c.b16 %v734, %v732
        %v877 = vpack.c.b16 %v737, %v735
        %v878 = vpack.c.b16 %v738, %v736
        %v879 = vpack.c.b16 %v741, %v739
        %v880 = vpack.c.b16 %v742, %v740
        %v881 = vpack.c.b16 %v745, %v743
        %v882 = vpack.c.b16 %v746, %v744
        %v883 = vpack.c.b16 %v749, %v747
        %v884 = vpack.c.b16 %v750, %v748
        %v885 = vpack.c.b16 %v753, %v751
        %v886 = vpack.c.b16 %v754, %v752
        %v887 = vpack.c.b16 %v757, %v755
        %v888 = vpack.c.b16 %v758, %v756
        %v889 = vpack.c.b16 %v761, %v759
        %v890 = vpack.c.b16 %v762, %v760
        %v974 = vunpack.c.l.b16 %v360
        %v975 = vunpack.c.l.b16 %v361
        %v976 = vunpack.c.l.b16 %v362
        %v977 = vunpack.c.l.b16 %v363
        %v978 = vunpack.c.l.b16 %v364
        %v979 = vunpack.c.l.b16 %v365
        %v980 = vunpack.c.l.b16 %v366
        %v981 = vunpack.c.l.b16 %v367
        %v982 = vunpack.c.l.b16 %v368
        %v983 = vunpack.c.l.b16 %v369
        %v984 = vunpack.c.l.b16 %v370
        %v985 = vunpack.c.l.b16 %v371
        %v986 = vunpack.c.l.b16 %v372
        %v987 = vunpack.c.l.b16 %v373
        %v988 = vunpack.c.l.b16 %v374
        %v989 = vunpack.c.l.b16 %v375
        %v990 = vunpack.c.l.b16 %v376
        %v991 = vunpack.c.l.b16 %v377
        %v992 = vunpack.c.l.b16 %v378
        %v993 = vpack.c.b16 %v975, %v974
        %v994 = vpack.c.b16 %v977, %v976
        %v995 = vpack.c.b16 %v979, %v978
        %v996 = vpack.c.b16 %v981, %v980
        %v997 = vpack.c.b16 %v983, %v982
        %v998 = vpack.c.b16 %v985, %v984
        %v999 = vpack.c.b16 %v987, %v986
        %v1000 = vpack.c.b16 %v989, %v988
        %v1001 = vpack.c.b16 %v991, %v990
        %v1002 = vpack.c.b16 %v992, %v992
        %vm1012 = vcmask 154624
        %v1014 = vsel %vm1012, %v764, 0
        %v1017 = vsel %vm1012, %v766, 0
        %v1020 = vsel %vm1012, %v768, 0
        %v1023 = vsel %vm1012, %v770, 0
        %v1026 = vsel %vm1012, %v772, 0
        %v1029 = vsel %vm1012, %v774, 0
        %v1032 = vsel %vm1012, %v776, 0
        %v1035 = vsel %vm1012, %v778, 0
        %v1038 = vsel %vm1012, %v780, 0
        %v1041 = vsel %vm1012, %v782, 0
        %v1044 = vsel %vm1012, %v784, 0
        %v1047 = vsel %vm1012, %v786, 0
        %v1050 = vsel %vm1012, %v788, 0
        %v1053 = vsel %vm1012, %v790, 0
        %v1056 = vsel %vm1012, %v792, 0
        %v1059 = vsel %vm1012, %v794, 0
        %v1062 = vsel %vm1012, %v796, 0
        %v1065 = vsel %vm1012, %v798, 0
        %v1068 = vsel %vm1012, %v800, 0
        %v1071 = vsel %vm1012, %v802, 0
        %v1074 = vsel %vm1012, %v804, 0
        %v1077 = vsel %vm1012, %v806, 0
        %v1080 = vsel %vm1012, %v808, 0
        %v1083 = vsel %vm1012, %v810, 0
        %v1086 = vsel %vm1012, %v812, 0
        %v1089 = vsel %vm1012, %v814, 0
        %v1092 = vsel %vm1012, %v816, 0
        %v1095 = vsel %vm1012, %v818, 0
        %v1098 = vsel %vm1012, %v820, 0
        %v1101 = vsel %vm1012, %v822, 0
        %v1104 = vsel %vm1012, %v824, 0
        %v1107 = vsel %vm1012, %v826, 0
        %v1110 = vsel %vm1012, %v828, 0
        %v1113 = vsel %vm1012, %v830, 0
        %v1116 = vsel %vm1012, %v832, 0
        %v1119 = vsel %vm1012, %v834, 0
        %v1122 = vsel %vm1012, %v836, 0
        %v1125 = vsel %vm1012, %v838, 0
        %v1128 = vsel %vm1012, %v840, 0
        %v1131 = vsel %vm1012, %v842, 0
        %v1134 = vsel %vm1012, %v844, 0
        %v1137 = vsel %vm1012, %v846, 0
        %v1140 = vsel %vm1012, %v848, 0
        %v1143 = vsel %vm1012, %v850, 0
        %v1146 = vsel %vm1012, %v852, 0
        %v1149 = vsel %vm1012, %v854, 0
        %v1152 = vsel %vm1012, %v856, 0
        %v1155 = vsel %vm1012, %v858, 0
        %v1158 = vsel %vm1012, %v860, 0
        %v1161 = vsel %vm1012, %v862, 0
        %v1164 = vsel %vm1012, %v864, 0
        %v1167 = vsel %vm1012, %v866, 0
        %v1170 = vsel %vm1012, %v868, 0
        %v1173 = vsel %vm1012, %v870, 0
        %v1176 = vsel %vm1012, %v872, 0
        %v1179 = vsel %vm1012, %v874, 0
        %v1182 = vsel %vm1012, %v876, 0
        %v1185 = vsel %vm1012, %v878, 0
        %v1188 = vsel %vm1012, %v880, 0
        %v1191 = vsel %vm1012, %v882, 0
        %v1194 = vsel %vm1012, %v884, 0
        %v1197 = vsel %vm1012, %v886, 0
        %v1200 = vsel %vm1012, %v888, 0
        %v1203 = vsel %vm1012, %v890, 0
        %vm1205 = vcmask 1040384
        %vm1206 = vcmask 1041408
        %v1207 = vsel %vm1205, 4294967295, 65535
        %v1208 = vsel %vm1206, %v1207, 0
        %v1210 = vand.u32 %v1002, %v1208
        %1212 = vmatprep.subr.bf16.mxu0 0
        %1213 = vmatpush1.bf16.msra.mxu0 %v993
        %1214 = vmatprep.subr.bf16.mxu0 0
        %1215 = vmatpush1.bf16.msra.mxu0 %v994
        %1216 = vmatprep.subr.bf16.mxu0 0
        %1217 = vmatpush1.bf16.msra.mxu0 %v995
        %1218 = vmatprep.subr.bf16.mxu0 0
        %1219 = vmatpush1.bf16.msra.mxu0 %v996
        %1220 = vmatprep.subr.bf16.mxu0 0
        %1221 = vmatpush1.bf16.msra.mxu0 %v997
        %1222 = vmatprep.subr.bf16.mxu0 0
        %1223 = vmatpush1.bf16.msra.mxu0 %v998
        %1224 = vmatprep.subr.bf16.mxu0 0
        %1225 = vmatpush1.bf16.msra.mxu0 %v999
        %1226 = vmatprep.subr.bf16.mxu0 0
        %1227 = vmatpush1.bf16.msra.mxu0 %v1000
        %1228 = vmatprep.subr.bf16.mxu0 0
        %1229 = vmatpush1.bf16.msra.mxu0 %v1001
        %1230 = vmatprep.subr.bf16.mxu0 0
        %1231 = vmatpush1.bf16.msra.mxu0 %v1210
        %1232 = vmatprep.subr.bf16.mxu0 0
        %1233 = vmatpush1.bf16.msra.mxu0 0
        %1234 = vmatprep.subr.bf16.mxu0 0
        %1235 = vmatpush1.bf16.msra.mxu0 0
        %1236 = vmatprep.subr.bf16.mxu0 0
        %1237 = vmatpush1.bf16.msra.mxu0 0
        %1238 = vmatprep.subr.bf16.mxu0 0
        %1239 = vmatpush1.bf16.msra.mxu0 0
        %1240 = vmatprep.subr.bf16.mxu0 0
        %1241 = vmatpush1.bf16.msra.mxu0 0
        %1242 = vmatprep.subr.bf16.mxu0 0
        %1243 = vmatpush1.bf16.msra.mxu0 0
        %1244 = vmatprep.mubr.bf16.mxu0 %v1014
        %1245 = vmatmul.mubr.bf16.gmra.mrb[0].mxu0 %v763
        %v1246 = vpop.f32.mrb[0].mxu0
        %v1247 = vadd.f32 0.0, %v1246
        %v1248 = vpop.f32.mrb[0].mxu0
        %v1249 = vpop.f32.mrb[0].mxu0
        %v1250 = vadd.f32 0.0, %v1249
        %v1251 = vpop.f32.mrb[0].mxu0
        %1252 = vmatprep.mubr.bf16.mxu0 %v1017
        %1253 = vmatmul.mubr.bf16.gmra.mrb[0].mxu0 %v765
        %v1254 = vpop.f32.mrb[0].mxu0
        %v1255 = vadd.f32 0.0, %v1254
        %v1256 = vpop.f32.mrb[0].mxu0
        %v1257 = vpop.f32.mrb[0].mxu0
        %v1258 = vadd.f32 0.0, %v1257
        %v1259 = vpop.f32.mrb[0].mxu0
        %1260 = vmatprep.mubr.bf16.mxu0 %v1020
        %1261 = vmatmul.mubr.bf16.gmra.mrb[0].mxu0 %v767
        %v1262 = vpop.f32.mrb[0].mxu0
        %v1263 = vadd.f32 0.0, %v1262
        %v1264 = vpop.f32.mrb[0].mxu0
        %v1265 = vpop.f32.mrb[0].mxu0
        %v1266 = vadd.f32 0.0, %v1265
        %v1267 = vpop.f32.mrb[0].mxu0
        %1268 = vmatprep.mubr.bf16.mxu0 %v1023
        %1269 = vmatmul.mubr.bf16.gmra.mrb[0].mxu0 %v769
        %v1270 = vpop.f32.mrb[0].mxu0
        %v1271 = vadd.f32 0.0, %v1270
        %v1272 = vpop.f32.mrb[0].mxu0
        %v1273 = vpop.f32.mrb[0].mxu0
        %v1274 = vadd.f32 0.0, %v1273
        %v1275 = vpop.f32.mrb[0].mxu0
        %1276 = vmatprep.mubr.bf16.mxu0 %v1026
        %1277 = vmatmul.mubr.bf16.gmra.mrb[0].mxu0 %v771
        %v1278 = vpop.f32.mrb[0].mxu0
        %v1279 = vadd.f32 0.0, %v1278
        %v1280 = vpop.f32.mrb[0].mxu0
        %v1281 = vpop.f32.mrb[0].mxu0
        %v1282 = vadd.f32 0.0, %v1281
        %v1283 = vpop.f32.mrb[0].mxu0
        %1284 = vmatprep.mubr.bf16.mxu0 %v1029
        %1285 = vmatmul.mubr.bf16.gmra.mrb[0].mxu0 %v773
        %v1286 = vpop.f32.mrb[0].mxu0
        %v1287 = vadd.f32 0.0, %v1286
        %v1288 = vpop.f32.mrb[0].mxu0
        %v1289 = vpop.f32.mrb[0].mxu0
        %v1290 = vadd.f32 0.0, %v1289
        %v1291 = vpop.f32.mrb[0].mxu0
        %1292 = vmatprep.mubr.bf16.mxu0 %v1032
        %1293 = vmatmul.mubr.bf16.gmra.mrb[0].mxu0 %v775
        %v1294 = vpop.f32.mrb[0].mxu0
        %v1295 = vadd.f32 0.0, %v1294
        %v1296 = vpop.f32.mrb[0].mxu0
        %v1297 = vpop.f32.mrb[0].mxu0
        %v1298 = vadd.f32 0.0, %v1297
        %v1299 = vpop.f32.mrb[0].mxu0
        %1300 = vmatprep.mubr.bf16.mxu0 %v1035
        %1301 = vmatmul.mubr.bf16.gmra.mrb[0].mxu0 %v777
        %v1302 = vpop.f32.mrb[0].mxu0
        %v1303 = vadd.f32 0.0, %v1302
        %v1304 = vpop.f32.mrb[0].mxu0
        %v1305 = vpop.f32.mrb[0].mxu0
        %v1306 = vadd.f32 0.0, %v1305
        %v1307 = vpop.f32.mrb[0].mxu0
        %1308 = vmatprep.mubr.bf16.mxu0 %v1038
        %1309 = vmatmul.mubr.bf16.gmra.mrb[0].mxu0 %v779
        %v1310 = vpop.f32.mrb[0].mxu0
        %v1311 = vadd.f32 0.0, %v1310
        %v1312 = vpop.f32.mrb[0].mxu0
        %v1313 = vpop.f32.mrb[0].mxu0
        %v1314 = vadd.f32 0.0, %v1313
        %v1315 = vpop.f32.mrb[0].mxu0
        %1316 = vmatprep.mubr.bf16.mxu0 %v1041
        %1317 = vmatmul.mubr.bf16.gmra.mrb[0].mxu0 %v781
        %v1318 = vpop.f32.mrb[0].mxu0
        %v1319 = vadd.f32 0.0, %v1318
        %v1320 = vpop.f32.mrb[0].mxu0
        %v1321 = vpop.f32.mrb[0].mxu0
        %v1322 = vadd.f32 0.0, %v1321
        %v1323 = vpop.f32.mrb[0].mxu0
        %1324 = vmatprep.mubr.bf16.mxu0 %v1044
        %1325 = vmatmul.mubr.bf16.gmra.mrb[0].mxu0 %v783
        %v1326 = vpop.f32.mrb[0].mxu0
        %v1327 = vadd.f32 0.0, %v1326
        %v1328 = vpop.f32.mrb[0].mxu0
        %v1329 = vpop.f32.mrb[0].mxu0
        %v1330 = vadd.f32 0.0, %v1329
        %v1331 = vpop.f32.mrb[0].mxu0
        %1332 = vmatprep.mubr.bf16.mxu0 %v1047
        %1333 = vmatmul.mubr.bf16.gmra.mrb[0].mxu0 %v785
        %v1334 = vpop.f32.mrb[0].mxu0
        %v1335 = vadd.f32 0.0, %v1334
        %v1336 = vpop.f32.mrb[0].mxu0
        %v1337 = vpop.f32.mrb[0].mxu0
        %v1338 = vadd.f32 0.0, %v1337
        %v1339 = vpop.f32.mrb[0].mxu0
        %1340 = vmatprep.mubr.bf16.mxu0 %v1050
        %1341 = vmatmul.mubr.bf16.gmra.mrb[0].mxu0 %v787
        %v1342 = vpop.f32.mrb[0].mxu0
        %v1343 = vadd.f32 0.0, %v1342
        %v1344 = vpop.f32.mrb[0].mxu0
        %v1345 = vpop.f32.mrb[0].mxu0
        %v1346 = vadd.f32 0.0, %v1345
        %v1347 = vpop.f32.mrb[0].mxu0
        %1348 = vmatprep.mubr.bf16.mxu0 %v1053
        %1349 = vmatmul.mubr.bf16.gmra.mrb[0].mxu0 %v789
        %v1350 = vpop.f32.mrb[0].mxu0
        %v1351 = vadd.f32 0.0, %v1350
        %v1352 = vpop.f32.mrb[0].mxu0
        %v1353 = vpop.f32.mrb[0].mxu0
        %v1354 = vadd.f32 0.0, %v1353
        %v1355 = vpop.f32.mrb[0].mxu0
        %1356 = vmatprep.mubr.bf16.mxu0 %v1056
        %1357 = vmatmul.mubr.bf16.gmra.mrb[0].mxu0 %v791
        %v1358 = vpop.f32.mrb[0].mxu0
        %v1359 = vadd.f32 0.0, %v1358
        %v1360 = vpop.f32.mrb[0].mxu0
        %v1361 = vpop.f32.mrb[0].mxu0
        %v1362 = vadd.f32 0.0, %v1361
        %v1363 = vpop.f32.mrb[0].mxu0
        %1364 = vmatprep.mubr.bf16.mxu0 %v1059
        %1365 = vmatmul.mubr.bf16.gmra.mrb[0].mxu0 %v793
        %v1366 = vpop.f32.mrb[0].mxu0
        %v1367 = vadd.f32 0.0, %v1366
        %v1368 = vpop.f32.mrb[0].mxu0
        %v1369 = vpop.f32.mrb[0].mxu0
        %v1370 = vadd.f32 0.0, %v1369
        %v1371 = vpop.f32.mrb[0].mxu0
        %1372 = vmatprep.mubr.bf16.mxu0 %v1062
        %1373 = vmatmul.mubr.bf16.gmra.mrb[0].mxu0 %v795
        %v1374 = vpop.f32.mrb[0].mxu0
        %v1375 = vadd.f32 0.0, %v1374
        %v1376 = vpop.f32.mrb[0].mxu0
        %v1377 = vpop.f32.mrb[0].mxu0
        %v1378 = vadd.f32 0.0, %v1377
        %v1379 = vpop.f32.mrb[0].mxu0
        %1380 = vmatprep.mubr.bf16.mxu0 %v1065
        %1381 = vmatmul.mubr.bf16.gmra.mrb[0].mxu0 %v797
        %v1382 = vpop.f32.mrb[0].mxu0
        %v1383 = vadd.f32 0.0, %v1382
        %v1384 = vpop.f32.mrb[0].mxu0
        %v1385 = vpop.f32.mrb[0].mxu0
        %v1386 = vadd.f32 0.0, %v1385
        %v1387 = vpop.f32.mrb[0].mxu0
        %1388 = vmatprep.mubr.bf16.mxu0 %v1068
        %1389 = vmatmul.mubr.bf16.gmra.mrb[0].mxu0 %v799
        %v1390 = vpop.f32.mrb[0].mxu0
        %v1391 = vadd.f32 0.0, %v1390
        %v1392 = vpop.f32.mrb[0].mxu0
        %v1393 = vpop.f32.mrb[0].mxu0
        %v1394 = vadd.f32 0.0, %v1393
        %v1395 = vpop.f32.mrb[0].mxu0
        %1396 = vmatprep.mubr.bf16.mxu0 %v1071
        %1397 = vmatmul.mubr.bf16.gmra.mrb[0].mxu0 %v801
        %v1398 = vpop.f32.mrb[0].mxu0
        %v1399 = vadd.f32 0.0, %v1398
        %v1400 = vpop.f32.mrb[0].mxu0
        %v1401 = vpop.f32.mrb[0].mxu0
        %v1402 = vadd.f32 0.0, %v1401
        %v1403 = vpop.f32.mrb[0].mxu0
        %1404 = vmatprep.mubr.bf16.mxu0 %v1074
        %1405 = vmatmul.mubr.bf16.gmra.mrb[0].mxu0 %v803
        %v1406 = vpop.f32.mrb[0].mxu0
        %v1407 = vadd.f32 0.0, %v1406
        %v1408 = vpop.f32.mrb[0].mxu0
        %v1409 = vpop.f32.mrb[0].mxu0
        %v1410 = vadd.f32 0.0, %v1409
        %v1411 = vpop.f32.mrb[0].mxu0
        %1412 = vmatprep.mubr.bf16.mxu0 %v1077
        %1413 = vmatmul.mubr.bf16.gmra.mrb[0].mxu0 %v805
        %v1414 = vpop.f32.mrb[0].mxu0
        %v1415 = vadd.f32 0.0, %v1414
        %v1416 = vpop.f32.mrb[0].mxu0
        %v1417 = vpop.f32.mrb[0].mxu0
        %v1418 = vadd.f32 0.0, %v1417
        %v1419 = vpop.f32.mrb[0].mxu0
        %1420 = vmatprep.mubr.bf16.mxu0 %v1080
        %1421 = vmatmul.mubr.bf16.gmra.mrb[0].mxu0 %v807
        %v1422 = vpop.f32.mrb[0].mxu0
        %v1423 = vadd.f32 0.0, %v1422
        %v1424 = vpop.f32.mrb[0].mxu0
        %v1425 = vpop.f32.mrb[0].mxu0
        %v1426 = vadd.f32 0.0, %v1425
        %v1427 = vpop.f32.mrb[0].mxu0
        %1428 = vmatprep.mubr.bf16.mxu0 %v1083
        %1429 = vmatmul.mubr.bf16.gmra.mrb[0].mxu0 %v809
        %v1430 = vpop.f32.mrb[0].mxu0
        %v1431 = vadd.f32 0.0, %v1430
        %v1432 = vpop.f32.mrb[0].mxu0
        %v1433 = vpop.f32.mrb[0].mxu0
        %v1434 = vadd.f32 0.0, %v1433
        %v1435 = vpop.f32.mrb[0].mxu0
        %1436 = vmatprep.mubr.bf16.mxu0 %v1086
        %1437 = vmatmul.mubr.bf16.gmra.mrb[0].mxu0 %v811
        %v1438 = vpop.f32.mrb[0].mxu0
        %v1439 = vadd.f32 0.0, %v1438
        %v1440 = vpop.f32.mrb[0].mxu0
        %v1441 = vpop.f32.mrb[0].mxu0
        %v1442 = vadd.f32 0.0, %v1441
        %v1443 = vpop.f32.mrb[0].mxu0
        %1444 = vmatprep.mubr.bf16.mxu0 %v1089
        %1445 = vmatmul.mubr.bf16.gmra.mrb[0].mxu0 %v813
        %v1446 = vpop.f32.mrb[0].mxu0
        %v1447 = vadd.f32 0.0, %v1446
        %v1448 = vpop.f32.mrb[0].mxu0
        %v1449 = vpop.f32.mrb[0].mxu0
        %v1450 = vadd.f32 0.0, %v1449
        %v1451 = vpop.f32.mrb[0].mxu0
        %1452 = vmatprep.mubr.bf16.mxu0 %v1092
        %1453 = vmatmul.mubr.bf16.gmra.mrb[0].mxu0 %v815
        %v1454 = vpop.f32.mrb[0].mxu0
        %v1455 = vadd.f32 0.0, %v1454
        %v1456 = vpop.f32.mrb[0].mxu0
        %v1457 = vpop.f32.mrb[0].mxu0
        %v1458 = vadd.f32 0.0, %v1457
        %v1459 = vpop.f32.mrb[0].mxu0
        %1460 = vmatprep.mubr.bf16.mxu0 %v1095
        %1461 = vmatmul.mubr.bf16.gmra.mrb[0].mxu0 %v817
        %v1462 = vpop.f32.mrb[0].mxu0
        %v1463 = vadd.f32 0.0, %v1462
        %v1464 = vpop.f32.mrb[0].mxu0
        %v1465 = vpop.f32.mrb[0].mxu0
        %v1466 = vadd.f32 0.0, %v1465
        %v1467 = vpop.f32.mrb[0].mxu0
        %1468 = vmatprep.mubr.bf16.mxu0 %v1098
        %1469 = vmatmul.mubr.bf16.gmra.mrb[0].mxu0 %v819
        %v1470 = vpop.f32.mrb[0].mxu0
        %v1471 = vadd.f32 0.0, %v1470
        %v1472 = vpop.f32.mrb[0].mxu0
        %v1473 = vpop.f32.mrb[0].mxu0
        %v1474 = vadd.f32 0.0, %v1473
        %v1475 = vpop.f32.mrb[0].mxu0
        %1476 = vmatprep.mubr.bf16.mxu0 %v1101
        %1477 = vmatmul.mubr.bf16.gmra.mrb[0].mxu0 %v821
        %v1478 = vpop.f32.mrb[0].mxu0
        %v1479 = vadd.f32 0.0, %v1478
        %v1480 = vpop.f32.mrb[0].mxu0
        %v1481 = vpop.f32.mrb[0].mxu0
        %v1482 = vadd.f32 0.0, %v1481
        %v1483 = vpop.f32.mrb[0].mxu0
        %1484 = vmatprep.mubr.bf16.mxu0 %v1104
        %1485 = vmatmul.mubr.bf16.gmra.mrb[0].mxu0 %v823
        %v1486 = vpop.f32.mrb[0].mxu0
        %v1487 = vadd.f32 0.0, %v1486
        %v1488 = vpop.f32.mrb[0].mxu0
        %v1489 = vpop.f32.mrb[0].mxu0
        %v1490 = vadd.f32 0.0, %v1489
        %v1491 = vpop.f32.mrb[0].mxu0
        %1492 = vmatprep.mubr.bf16.mxu0 %v1107
        %1493 = vmatmul.mubr.bf16.gmra.mrb[0].mxu0 %v825
        %v1494 = vpop.f32.mrb[0].mxu0
        %v1495 = vadd.f32 0.0, %v1494
        %v1496 = vpop.f32.mrb[0].mxu0
        %v1497 = vpop.f32.mrb[0].mxu0
        %v1498 = vadd.f32 0.0, %v1497
        %v1499 = vpop.f32.mrb[0].mxu0
        %1500 = vmatprep.mubr.bf16.mxu0 %v1110
        %1501 = vmatmul.mubr.bf16.gmra.mrb[0].mxu0 %v827
        %v1502 = vpop.f32.mrb[0].mxu0
        %v1503 = vadd.f32 0.0, %v1502
        %v1504 = vpop.f32.mrb[0].mxu0
        %v1505 = vpop.f32.mrb[0].mxu0
        %v1506 = vadd.f32 0.0, %v1505
        %v1507 = vpop.f32.mrb[0].mxu0
        %1508 = vmatprep.mubr.bf16.mxu0 %v1113
        %1509 = vmatmul.mubr.bf16.gmra.mrb[0].mxu0 %v829
        %v1510 = vpop.f32.mrb[0].mxu0
        %v1511 = vadd.f32 0.0, %v1510
        %v1512 = vpop.f32.mrb[0].mxu0
        %v1513 = vpop.f32.mrb[0].mxu0
        %v1514 = vadd.f32 0.0, %v1513
        %v1515 = vpop.f32.mrb[0].mxu0
        %1516 = vmatprep.mubr.bf16.mxu0 %v1116
        %1517 = vmatmul.mubr.bf16.gmra.mrb[0].mxu0 %v831
        %v1518 = vpop.f32.mrb[0].mxu0
        %v1519 = vadd.f32 0.0, %v1518
        %v1520 = vpop.f32.mrb[0].mxu0
        %v1521 = vpop.f32.mrb[0].mxu0
        %v1522 = vadd.f32 0.0, %v1521
        %v1523 = vpop.f32.mrb[0].mxu0
        %1524 = vmatprep.mubr.bf16.mxu0 %v1119
        %1525 = vmatmul.mubr.bf16.gmra.mrb[0].mxu0 %v833
        %v1526 = vpop.f32.mrb[0].mxu0
        %v1527 = vadd.f32 0.0, %v1526
        %v1528 = vpop.f32.mrb[0].mxu0
        %v1529 = vpop.f32.mrb[0].mxu0
        %v1530 = vadd.f32 0.0, %v1529
        %v1531 = vpop.f32.mrb[0].mxu0
        %1532 = vmatprep.mubr.bf16.mxu0 %v1122
        %1533 = vmatmul.mubr.bf16.gmra.mrb[0].mxu0 %v835
        %v1534 = vpop.f32.mrb[0].mxu0
        %v1535 = vadd.f32 0.0, %v1534
        %v1536 = vpop.f32.mrb[0].mxu0
        %v1537 = vpop.f32.mrb[0].mxu0
        %v1538 = vadd.f32 0.0, %v1537
        %v1539 = vpop.f32.mrb[0].mxu0
        %1540 = vmatprep.mubr.bf16.mxu0 %v1125
        %1541 = vmatmul.mubr.bf16.gmra.mrb[0].mxu0 %v837
        %v1542 = vpop.f32.mrb[0].mxu0
        %v1543 = vadd.f32 0.0, %v1542
        %v1544 = vpop.f32.mrb[0].mxu0
        %v1545 = vpop.f32.mrb[0].mxu0
        %v1546 = vadd.f32 0.0, %v1545
        %v1547 = vpop.f32.mrb[0].mxu0
        %1548 = vmatprep.mubr.bf16.mxu0 %v1128
        %1549 = vmatmul.mubr.bf16.gmra.mrb[0].mxu0 %v839
        %v1550 = vpop.f32.mrb[0].mxu0
        %v1551 = vadd.f32 0.0, %v1550
        %v1552 = vpop.f32.mrb[0].mxu0
        %v1553 = vpop.f32.mrb[0].mxu0
        %v1554 = vadd.f32 0.0, %v1553
        %v1555 = vpop.f32.mrb[0].mxu0
        %1556 = vmatprep.mubr.bf16.mxu0 %v1131
        %1557 = vmatmul.mubr.bf16.gmra.mrb[0].mxu0 %v841
        %v1558 = vpop.f32.mrb[0].mxu0
        %v1559 = vadd.f32 0.0, %v1558
        %v1560 = vpop.f32.mrb[0].mxu0
        %v1561 = vpop.f32.mrb[0].mxu0
        %v1562 = vadd.f32 0.0, %v1561
        %v1563 = vpop.f32.mrb[0].mxu0
        %1564 = vmatprep.mubr.bf16.mxu0 %v1134
        %1565 = vmatmul.mubr.bf16.gmra.mrb[0].mxu0 %v843
        %v1566 = vpop.f32.mrb[0].mxu0
        %v1567 = vadd.f32 0.0, %v1566
        %v1568 = vpop.f32.mrb[0].mxu0
        %v1569 = vpop.f32.mrb[0].mxu0
        %v1570 = vadd.f32 0.0, %v1569
        %v1571 = vpop.f32.mrb[0].mxu0
        %1572 = vmatprep.mubr.bf16.mxu0 %v1137
        %1573 = vmatmul.mubr.bf16.gmra.mrb[0].mxu0 %v845
        %v1574 = vpop.f32.mrb[0].mxu0
        %v1575 = vadd.f32 0.0, %v1574
        %v1576 = vpop.f32.mrb[0].mxu0
        %v1577 = vpop.f32.mrb[0].mxu0
        %v1578 = vadd.f32 0.0, %v1577
        %v1579 = vpop.f32.mrb[0].mxu0
        %1580 = vmatprep.mubr.bf16.mxu0 %v1140
        %1581 = vmatmul.mubr.bf16.gmra.mrb[0].mxu0 %v847
        %v1582 = vpop.f32.mrb[0].mxu0
        %v1583 = vadd.f32 0.0, %v1582
        %v1584 = vpop.f32.mrb[0].mxu0
        %v1585 = vpop.f32.mrb[0].mxu0
        %v1586 = vadd.f32 0.0, %v1585
        %v1587 = vpop.f32.mrb[0].mxu0
        %1588 = vmatprep.mubr.bf16.mxu0 %v1143
        %1589 = vmatmul.mubr.bf16.gmra.mrb[0].mxu0 %v849
        %v1590 = vpop.f32.mrb[0].mxu0
        %v1591 = vadd.f32 0.0, %v1590
        %v1592 = vpop.f32.mrb[0].mxu0
        %v1593 = vpop.f32.mrb[0].mxu0
        %v1594 = vadd.f32 0.0, %v1593
        %v1595 = vpop.f32.mrb[0].mxu0
        %1596 = vmatprep.mubr.bf16.mxu0 %v1146
        %1597 = vmatmul.mubr.bf16.gmra.mrb[0].mxu0 %v851
        %v1598 = vpop.f32.mrb[0].mxu0
        %v1599 = vadd.f32 0.0, %v1598
        %v1600 = vpop.f32.mrb[0].mxu0
        %v1601 = vpop.f32.mrb[0].mxu0
        %v1602 = vadd.f32 0.0, %v1601
        %v1603 = vpop.f32.mrb[0].mxu0
        %1604 = vmatprep.mubr.bf16.mxu0 %v1149
        %1605 = vmatmul.mubr.bf16.gmra.mrb[0].mxu0 %v853
        %v1606 = vpop.f32.mrb[0].mxu0
        %v1607 = vadd.f32 0.0, %v1606
        %v1608 = vpop.f32.mrb[0].mxu0
        %v1609 = vpop.f32.mrb[0].mxu0
        %v1610 = vadd.f32 0.0, %v1609
        %v1611 = vpop.f32.mrb[0].mxu0
        %1612 = vmatprep.mubr.bf16.mxu0 %v1152
        %1613 = vmatmul.mubr.bf16.gmra.mrb[0].mxu0 %v855
        %v1614 = vpop.f32.mrb[0].mxu0
        %v1615 = vadd.f32 0.0, %v1614
        %v1616 = vpop.f32.mrb[0].mxu0
        %v1617 = vpop.f32.mrb[0].mxu0
        %v1618 = vadd.f32 0.0, %v1617
        %v1619 = vpop.f32.mrb[0].mxu0
        %1620 = vmatprep.mubr.bf16.mxu0 %v1155
        %1621 = vmatmul.mubr.bf16.gmra.mrb[0].mxu0 %v857
        %v1622 = vpop.f32.mrb[0].mxu0
        %v1623 = vadd.f32 0.0, %v1622
        %v1624 = vpop.f32.mrb[0].mxu0
        %v1625 = vpop.f32.mrb[0].mxu0
        %v1626 = vadd.f32 0.0, %v1625
        %v1627 = vpop.f32.mrb[0].mxu0
        %1628 = vmatprep.mubr.bf16.mxu0 %v1158
        %1629 = vmatmul.mubr.bf16.gmra.mrb[0].mxu0 %v859
        %v1630 = vpop.f32.mrb[0].mxu0
        %v1631 = vadd.f32 0.0, %v1630
        %v1632 = vpop.f32.mrb[0].mxu0
        %v1633 = vpop.f32.mrb[0].mxu0
        %v1634 = vadd.f32 0.0, %v1633
        %v1635 = vpop.f32.mrb[0].mxu0
        %1636 = vmatprep.mubr.bf16.mxu0 %v1161
        %1637 = vmatmul.mubr.bf16.gmra.mrb[0].mxu0 %v861
        %v1638 = vpop.f32.mrb[0].mxu0
        %v1639 = vadd.f32 0.0, %v1638
        %v1640 = vpop.f32.mrb[0].mxu0
        %v1641 = vpop.f32.mrb[0].mxu0
        %v1642 = vadd.f32 0.0, %v1641
        %v1643 = vpop.f32.mrb[0].mxu0
        %1644 = vmatprep.mubr.bf16.mxu0 %v1164
        %1645 = vmatmul.mubr.bf16.gmra.mrb[0].mxu0 %v863
        %v1646 = vpop.f32.mrb[0].mxu0
        %v1647 = vadd.f32 0.0, %v1646
        %v1648 = vpop.f32.mrb[0].mxu0
        %v1649 = vpop.f32.mrb[0].mxu0
        %v1650 = vadd.f32 0.0, %v1649
        %v1651 = vpop.f32.mrb[0].mxu0
        %1652 = vmatprep.mubr.bf16.mxu0 %v1167
        %1653 = vmatmul.mubr.bf16.gmra.mrb[0].mxu0 %v865
        %v1654 = vpop.f32.mrb[0].mxu0
        %v1655 = vadd.f32 0.0, %v1654
        %v1656 = vpop.f32.mrb[0].mxu0
        %v1657 = vpop.f32.mrb[0].mxu0
        %v1658 = vadd.f32 0.0, %v1657
        %v1659 = vpop.f32.mrb[0].mxu0
        %1660 = vmatprep.mubr.bf16.mxu0 %v1170
        %1661 = vmatmul.mubr.bf16.gmra.mrb[0].mxu0 %v867
        %v1662 = vpop.f32.mrb[0].mxu0
        %v1663 = vadd.f32 0.0, %v1662
        %v1664 = vpop.f32.mrb[0].mxu0
        %v1665 = vpop.f32.mrb[0].mxu0
        %v1666 = vadd.f32 0.0, %v1665
        %v1667 = vpop.f32.mrb[0].mxu0
        %1668 = vmatprep.mubr.bf16.mxu0 %v1173
        %1669 = vmatmul.mubr.bf16.gmra.mrb[0].mxu0 %v869
        %v1670 = vpop.f32.mrb[0].mxu0
        %v1671 = vadd.f32 0.0, %v1670
        %v1672 = vpop.f32.mrb[0].mxu0
        %v1673 = vpop.f32.mrb[0].mxu0
        %v1674 = vadd.f32 0.0, %v1673
        %v1675 = vpop.f32.mrb[0].mxu0
        %1676 = vmatprep.mubr.bf16.mxu0 %v1176
        %1677 = vmatmul.mubr.bf16.gmra.mrb[0].mxu0 %v871
        %v1678 = vpop.f32.mrb[0].mxu0
        %v1679 = vadd.f32 0.0, %v1678
        %v1680 = vpop.f32.mrb[0].mxu0
        %v1681 = vpop.f32.mrb[0].mxu0
        %v1682 = vadd.f32 0.0, %v1681
        %v1683 = vpop.f32.mrb[0].mxu0
        %1684 = vmatprep.mubr.bf16.mxu0 %v1179
        %1685 = vmatmul.mubr.bf16.gmra.mrb[0].mxu0 %v873
        %v1686 = vpop.f32.mrb[0].mxu0
        %v1687 = vadd.f32 0.0, %v1686
        %v1688 = vpop.f32.mrb[0].mxu0
        %v1689 = vpop.f32.mrb[0].mxu0
        %v1690 = vadd.f32 0.0, %v1689
        %v1691 = vpop.f32.mrb[0].mxu0
        %1692 = vmatprep.mubr.bf16.mxu0 %v1182
        %1693 = vmatmul.mubr.bf16.gmra.mrb[0].mxu0 %v875
        %v1694 = vpop.f32.mrb[0].mxu0
        %v1695 = vadd.f32 0.0, %v1694
        %v1696 = vpop.f32.mrb[0].mxu0
        %v1697 = vpop.f32.mrb[0].mxu0
        %v1698 = vadd.f32 0.0, %v1697
        %v1699 = vpop.f32.mrb[0].mxu0
        %1700 = vmatprep.mubr.bf16.mxu0 %v1185
        %1701 = vmatmul.mubr.bf16.gmra.mrb[0].mxu0 %v877
        %v1702 = vpop.f32.mrb[0].mxu0
        %v1703 = vadd.f32 0.0, %v1702
        %v1704 = vpop.f32.mrb[0].mxu0
        %v1705 = vpop.f32.mrb[0].mxu0
        %v1706 = vadd.f32 0.0, %v1705
        %v1707 = vpop.f32.mrb[0].mxu0
        %1708 = vmatprep.mubr.bf16.mxu0 %v1188
        %1709 = vmatmul.mubr.bf16.gmra.mrb[0].mxu0 %v879
        %v1710 = vpop.f32.mrb[0].mxu0
        %v1711 = vadd.f32 0.0, %v1710
        %v1712 = vpop.f32.mrb[0].mxu0
        %v1713 = vpop.f32.mrb[0].mxu0
        %v1714 = vadd.f32 0.0, %v1713
        %v1715 = vpop.f32.mrb[0].mxu0
        %1716 = vmatprep.mubr.bf16.mxu0 %v1191
        %1717 = vmatmul.mubr.bf16.gmra.mrb[0].mxu0 %v881
        %v1718 = vpop.f32.mrb[0].mxu0
        %v1719 = vadd.f32 0.0, %v1718
        %v1720 = vpop.f32.mrb[0].mxu0
        %v1721 = vpop.f32.mrb[0].mxu0
        %v1722 = vadd.f32 0.0, %v1721
        %v1723 = vpop.f32.mrb[0].mxu0
        %1724 = vmatprep.mubr.bf16.mxu0 %v1194
        %1725 = vmatmul.mubr.bf16.gmra.mrb[0].mxu0 %v883
        %v1726 = vpop.f32.mrb[0].mxu0
        %v1727 = vadd.f32 0.0, %v1726
        %v1728 = vpop.f32.mrb[0].mxu0
        %v1729 = vpop.f32.mrb[0].mxu0
        %v1730 = vadd.f32 0.0, %v1729
        %v1731 = vpop.f32.mrb[0].mxu0
        %1732 = vmatprep.mubr.bf16.mxu0 %v1197
        %1733 = vmatmul.mubr.bf16.gmra.mrb[0].mxu0 %v885
        %v1734 = vpop.f32.mrb[0].mxu0
        %v1735 = vadd.f32 0.0, %v1734
        %v1736 = vpop.f32.mrb[0].mxu0
        %v1737 = vpop.f32.mrb[0].mxu0
        %v1738 = vadd.f32 0.0, %v1737
        %v1739 = vpop.f32.mrb[0].mxu0
        %1740 = vmatprep.mubr.bf16.mxu0 %v1200
        %1741 = vmatmul.mubr.bf16.gmra.mrb[0].mxu0 %v887
        %v1742 = vpop.f32.mrb[0].mxu0
        %v1743 = vadd.f32 0.0, %v1742
        %v1744 = vpop.f32.mrb[0].mxu0
        %v1745 = vpop.f32.mrb[0].mxu0
        %v1746 = vadd.f32 0.0, %v1745
        %v1747 = vpop.f32.mrb[0].mxu0
        %1748 = vmatprep.mubr.bf16.mxu0 %v1203
        %1749 = vmatmul.mubr.bf16.gmra.mrb[0].mxu0 %v889
        %v1750 = vpop.f32.mrb[0].mxu0
        %v1751 = vadd.f32 0.0, %v1750
        %v1752 = vpop.f32.mrb[0].mxu0
        %v1753 = vpop.f32.mrb[0].mxu0
        %v1754 = vadd.f32 0.0, %v1753
        %v1755 = vpop.f32.mrb[0].mxu0
        %1756 = vdwg.mxu0
        %v1757 = vld [vmem:[%s2] sm:$0x1]
        %v1759 = vlaneseq
        %v1760 = vshrl.u32 %v1759, 7
        %v1761 = vsub.s32 0, %v1760
        %v1762 = vrot.slane %v1757, %v1761
        %v1764 = vmul.f32 %v1247, %v1762
        %v1765 = vmul.f32 %v1250, %v1762
        %v1766 = vmul.f32 %v1255, %v1762
        %v1767 = vmul.f32 %v1258, %v1762
        %v1768 = vmul.f32 %v1263, %v1762
        %v1769 = vmul.f32 %v1266, %v1762
        %v1770 = vmul.f32 %v1271, %v1762
        %v1771 = vmul.f32 %v1274, %v1762
        %v1772 = vmul.f32 %v1279, %v1762
        %v1773 = vmul.f32 %v1282, %v1762
        %v1774 = vmul.f32 %v1287, %v1762
        %v1775 = vmul.f32 %v1290, %v1762
        %v1776 = vmul.f32 %v1295, %v1762
        %v1777 = vmul.f32 %v1298, %v1762
        %v1778 = vmul.f32 %v1303, %v1762
        %v1779 = vmul.f32 %v1306, %v1762
        %v1780 = vmul.f32 %v1311, %v1762
        %v1781 = vmul.f32 %v1314, %v1762
        %v1782 = vmul.f32 %v1319, %v1762
        %v1783 = vmul.f32 %v1322, %v1762
        %v1784 = vmul.f32 %v1327, %v1762
        %v1785 = vmul.f32 %v1330, %v1762
        %v1786 = vmul.f32 %v1335, %v1762
        %v1787 = vmul.f32 %v1338, %v1762
        %v1788 = vmul.f32 %v1343, %v1762
        %v1789 = vmul.f32 %v1346, %v1762
        %v1790 = vmul.f32 %v1351, %v1762
        %v1791 = vmul.f32 %v1354, %v1762
        %v1792 = vmul.f32 %v1359, %v1762
        %v1793 = vmul.f32 %v1362, %v1762
        %v1794 = vmul.f32 %v1367, %v1762
        %v1795 = vmul.f32 %v1370, %v1762
        %v1796 = vmul.f32 %v1375, %v1762
        %v1797 = vmul.f32 %v1378, %v1762
        %v1798 = vmul.f32 %v1383, %v1762
        %v1799 = vmul.f32 %v1386, %v1762
        %v1800 = vmul.f32 %v1391, %v1762
        %v1801 = vmul.f32 %v1394, %v1762
        %v1802 = vmul.f32 %v1399, %v1762
        %v1803 = vmul.f32 %v1402, %v1762
        %v1804 = vmul.f32 %v1407, %v1762
        %v1805 = vmul.f32 %v1410, %v1762
        %v1806 = vmul.f32 %v1415, %v1762
        %v1807 = vmul.f32 %v1418, %v1762
        %v1808 = vmul.f32 %v1423, %v1762
        %v1809 = vmul.f32 %v1426, %v1762
        %v1810 = vmul.f32 %v1431, %v1762
        %v1811 = vmul.f32 %v1434, %v1762
        %v1812 = vmul.f32 %v1439, %v1762
        %v1813 = vmul.f32 %v1442, %v1762
        %v1814 = vmul.f32 %v1447, %v1762
        %v1815 = vmul.f32 %v1450, %v1762
        %v1816 = vmul.f32 %v1455, %v1762
        %v1817 = vmul.f32 %v1458, %v1762
        %v1818 = vmul.f32 %v1463, %v1762
        %v1819 = vmul.f32 %v1466, %v1762
        %v1820 = vmul.f32 %v1471, %v1762
        %v1821 = vmul.f32 %v1474, %v1762
        %v1822 = vmul.f32 %v1479, %v1762
        %v1823 = vmul.f32 %v1482, %v1762
        %v1824 = vmul.f32 %v1487, %v1762
        %v1825 = vmul.f32 %v1490, %v1762
        %v1826 = vmul.f32 %v1495, %v1762
        %v1827 = vmul.f32 %v1498, %v1762
        %v1828 = vmul.f32 %v1503, %v1762
        %v1829 = vmul.f32 %v1506, %v1762
        %v1830 = vmul.f32 %v1511, %v1762
        %v1831 = vmul.f32 %v1514, %v1762
        %v1832 = vmul.f32 %v1519, %v1762
        %v1833 = vmul.f32 %v1522, %v1762
        %v1834 = vmul.f32 %v1527, %v1762
        %v1835 = vmul.f32 %v1530, %v1762
        %v1836 = vmul.f32 %v1535, %v1762
        %v1837 = vmul.f32 %v1538, %v1762
        %v1838 = vmul.f32 %v1543, %v1762
        %v1839 = vmul.f32 %v1546, %v1762
        %v1840 = vmul.f32 %v1551, %v1762
        %v1841 = vmul.f32 %v1554, %v1762
        %v1842 = vmul.f32 %v1559, %v1762
        %v1843 = vmul.f32 %v1562, %v1762
        %v1844 = vmul.f32 %v1567, %v1762
        %v1845 = vmul.f32 %v1570, %v1762
        %v1846 = vmul.f32 %v1575, %v1762
        %v1847 = vmul.f32 %v1578, %v1762
        %v1848 = vmul.f32 %v1583, %v1762
        %v1849 = vmul.f32 %v1586, %v1762
        %v1850 = vmul.f32 %v1591, %v1762
        %v1851 = vmul.f32 %v1594, %v1762
        %v1852 = vmul.f32 %v1599, %v1762
        %v1853 = vmul.f32 %v1602, %v1762
        %v1854 = vmul.f32 %v1607, %v1762
        %v1855 = vmul.f32 %v1610, %v1762
        %v1856 = vmul.f32 %v1615, %v1762
        %v1857 = vmul.f32 %v1618, %v1762
        %v1858 = vmul.f32 %v1623, %v1762
        %v1859 = vmul.f32 %v1626, %v1762
        %v1860 = vmul.f32 %v1631, %v1762
        %v1861 = vmul.f32 %v1634, %v1762
        %v1862 = vmul.f32 %v1639, %v1762
        %v1863 = vmul.f32 %v1642, %v1762
        %v1864 = vmul.f32 %v1647, %v1762
        %v1865 = vmul.f32 %v1650, %v1762
        %v1866 = vmul.f32 %v1655, %v1762
        %v1867 = vmul.f32 %v1658, %v1762
        %v1868 = vmul.f32 %v1663, %v1762
        %v1869 = vmul.f32 %v1666, %v1762
        %v1870 = vmul.f32 %v1671, %v1762
        %v1871 = vmul.f32 %v1674, %v1762
        %v1872 = vmul.f32 %v1679, %v1762
        %v1873 = vmul.f32 %v1682, %v1762
        %v1874 = vmul.f32 %v1687, %v1762
        %v1875 = vmul.f32 %v1690, %v1762
        %v1876 = vmul.f32 %v1695, %v1762
        %v1877 = vmul.f32 %v1698, %v1762
        %v1878 = vmul.f32 %v1703, %v1762
        %v1879 = vmul.f32 %v1706, %v1762
        %v1880 = vmul.f32 %v1711, %v1762
        %v1881 = vmul.f32 %v1714, %v1762
        %v1882 = vmul.f32 %v1719, %v1762
        %v1883 = vmul.f32 %v1722, %v1762
        %v1884 = vmul.f32 %v1727, %v1762
        %v1885 = vmul.f32 %v1730, %v1762
        %v1886 = vmul.f32 %v1735, %v1762
        %v1887 = vmul.f32 %v1738, %v1762
        %v1888 = vmul.f32 %v1743, %v1762
        %v1889 = vmul.f32 %v1746, %v1762
        %v1890 = vmul.f32 %v1751, %v1762
        %v1891 = vmul.f32 %v1754, %v1762
        %v1892 = vld [vmem:[%s3] sm:$0x1]
        %v1894 = vlaneseq
        %v1895 = vshrl.u32 %v1894, 7
        %v1896 = vsub.s32 0, %v1895
        %v1897 = vrot.slane %v1892, %v1896
        %v1899 = vadd.f32 %v1764, %v1897
        %v1900 = vadd.f32 %v1765, %v1897
        %v1901 = vadd.f32 %v1766, %v1897
        %v1902 = vadd.f32 %v1767, %v1897
        %v1903 = vadd.f32 %v1768, %v1897
        %v1904 = vadd.f32 %v1769, %v1897
        %v1905 = vadd.f32 %v1770, %v1897
        %v1906 = vadd.f32 %v1771, %v1897
        %v1907 = vadd.f32 %v1772, %v1897
        %v1908 = vadd.f32 %v1773, %v1897
        %v1909 = vadd.f32 %v1774, %v1897
        %v1910 = vadd.f32 %v1775, %v1897
        %v1911 = vadd.f32 %v1776, %v1897
        %v1912 = vadd.f32 %v1777, %v1897
        %v1913 = vadd.f32 %v1778, %v1897
        %v1914 = vadd.f32 %v1779, %v1897
        %v1915 = vadd.f32 %v1780, %v1897
        %v1916 = vadd.f32 %v1781, %v1897
        %v1917 = vadd.f32 %v1782, %v1897
        %v1918 = vadd.f32 %v1783, %v1897
        %v1919 = vadd.f32 %v1784, %v1897
        %v1920 = vadd.f32 %v1785, %v1897
        %v1921 = vadd.f32 %v1786, %v1897
        %v1922 = vadd.f32 %v1787, %v1897
        %v1923 = vadd.f32 %v1788, %v1897
        %v1924 = vadd.f32 %v1789, %v1897
        %v1925 = vadd.f32 %v1790, %v1897
        %v1926 = vadd.f32 %v1791, %v1897
        %v1927 = vadd.f32 %v1792, %v1897
        %v1928 = vadd.f32 %v1793, %v1897
        %v1929 = vadd.f32 %v1794, %v1897
        %v1930 = vadd.f32 %v1795, %v1897
        %v1931 = vadd.f32 %v1796, %v1897
        %v1932 = vadd.f32 %v1797, %v1897
        %v1933 = vadd.f32 %v1798, %v1897
        %v1934 = vadd.f32 %v1799, %v1897
        %v1935 = vadd.f32 %v1800, %v1897
        %v1936 = vadd.f32 %v1801, %v1897
        %v1937 = vadd.f32 %v1802, %v1897
        %v1938 = vadd.f32 %v1803, %v1897
        %v1939 = vadd.f32 %v1804, %v1897
        %v1940 = vadd.f32 %v1805, %v1897
        %v1941 = vadd.f32 %v1806, %v1897
        %v1942 = vadd.f32 %v1807, %v1897
        %v1943 = vadd.f32 %v1808, %v1897
        %v1944 = vadd.f32 %v1809, %v1897
        %v1945 = vadd.f32 %v1810, %v1897
        %v1946 = vadd.f32 %v1811, %v1897
        %v1947 = vadd.f32 %v1812, %v1897
        %v1948 = vadd.f32 %v1813, %v1897
        %v1949 = vadd.f32 %v1814, %v1897
        %v1950 = vadd.f32 %v1815, %v1897
        %v1951 = vadd.f32 %v1816, %v1897
        %v1952 = vadd.f32 %v1817, %v1897
        %v1953 = vadd.f32 %v1818, %v1897
        %v1954 = vadd.f32 %v1819, %v1897
        %v1955 = vadd.f32 %v1820, %v1897
        %v1956 = vadd.f32 %v1821, %v1897
        %v1957 = vadd.f32 %v1822, %v1897
        %v1958 = vadd.f32 %v1823, %v1897
        %v1959 = vadd.f32 %v1824, %v1897
        %v1960 = vadd.f32 %v1825, %v1897
        %v1961 = vadd.f32 %v1826, %v1897
        %v1962 = vadd.f32 %v1827, %v1897
        %v1963 = vadd.f32 %v1828, %v1897
        %v1964 = vadd.f32 %v1829, %v1897
        %v1965 = vadd.f32 %v1830, %v1897
        %v1966 = vadd.f32 %v1831, %v1897
        %v1967 = vadd.f32 %v1832, %v1897
        %v1968 = vadd.f32 %v1833, %v1897
        %v1969 = vadd.f32 %v1834, %v1897
        %v1970 = vadd.f32 %v1835, %v1897
        %v1971 = vadd.f32 %v1836, %v1897
        %v1972 = vadd.f32 %v1837, %v1897
        %v1973 = vadd.f32 %v1838, %v1897
        %v1974 = vadd.f32 %v1839, %v1897
        %v1975 = vadd.f32 %v1840, %v1897
        %v1976 = vadd.f32 %v1841, %v1897
        %v1977 = vadd.f32 %v1842, %v1897
        %v1978 = vadd.f32 %v1843, %v1897
        %v1979 = vadd.f32 %v1844, %v1897
        %v1980 = vadd.f32 %v1845, %v1897
        %v1981 = vadd.f32 %v1846, %v1897
        %v1982 = vadd.f32 %v1847, %v1897
        %v1983 = vadd.f32 %v1848, %v1897
        %v1984 = vadd.f32 %v1849, %v1897
        %v1985 = vadd.f32 %v1850, %v1897
        %v1986 = vadd.f32 %v1851, %v1897
        %v1987 = vadd.f32 %v1852, %v1897
        %v1988 = vadd.f32 %v1853, %v1897
        %v1989 = vadd.f32 %v1854, %v1897
        %v1990 = vadd.f32 %v1855, %v1897
        %v1991 = vadd.f32 %v1856, %v1897
        %v1992 = vadd.f32 %v1857, %v1897
        %v1993 = vadd.f32 %v1858, %v1897
        %v1994 = vadd.f32 %v1859, %v1897
        %v1995 = vadd.f32 %v1860, %v1897
        %v1996 = vadd.f32 %v1861, %v1897
        %v1997 = vadd.f32 %v1862, %v1897
        %v1998 = vadd.f32 %v1863, %v1897
        %v1999 = vadd.f32 %v1864, %v1897
        %v2000 = vadd.f32 %v1865, %v1897
        %v2001 = vadd.f32 %v1866, %v1897
        %v2002 = vadd.f32 %v1867, %v1897
        %v2003 = vadd.f32 %v1868, %v1897
        %v2004 = vadd.f32 %v1869, %v1897
        %v2005 = vadd.f32 %v1870, %v1897
        %v2006 = vadd.f32 %v1871, %v1897
        %v2007 = vadd.f32 %v1872, %v1897
        %v2008 = vadd.f32 %v1873, %v1897
        %v2009 = vadd.f32 %v1874, %v1897
        %v2010 = vadd.f32 %v1875, %v1897
        %v2011 = vadd.f32 %v1876, %v1897
        %v2012 = vadd.f32 %v1877, %v1897
        %v2013 = vadd.f32 %v1878, %v1897
        %v2014 = vadd.f32 %v1879, %v1897
        %v2015 = vadd.f32 %v1880, %v1897
        %v2016 = vadd.f32 %v1881, %v1897
        %v2017 = vadd.f32 %v1882, %v1897
        %v2018 = vadd.f32 %v1883, %v1897
        %v2019 = vadd.f32 %v1884, %v1897
        %v2020 = vadd.f32 %v1885, %v1897
        %v2021 = vadd.f32 %v1886, %v1897
        %v2022 = vadd.f32 %v1887, %v1897
        %v2023 = vadd.f32 %v1888, %v1897
        %v2024 = vadd.f32 %v1889, %v1897
        %v2025 = vadd.f32 %v1890, %v1897
        %v2026 = vadd.f32 %v1891, %v1897
        %v2027 = vmax.f32 %v1899, 0.0
        %v2028 = vmax.f32 %v1900, 0.0
        %v2029 = vmax.f32 %v1901, 0.0
        %v2030 = vmax.f32 %v1902, 0.0
        %v2031 = vmax.f32 %v1903, 0.0
        %v2032 = vmax.f32 %v1904, 0.0
        %v2033 = vmax.f32 %v1905, 0.0
        %v2034 = vmax.f32 %v1906, 0.0
        %v2035 = vmax.f32 %v1907, 0.0
        %v2036 = vmax.f32 %v1908, 0.0
        %v2037 = vmax.f32 %v1909, 0.0
        %v2038 = vmax.f32 %v1910, 0.0
        %v2039 = vmax.f32 %v1911, 0.0
        %v2040 = vmax.f32 %v1912, 0.0
        %v2041 = vmax.f32 %v1913, 0.0
        %v2042 = vmax.f32 %v1914, 0.0
        %v2043 = vmax.f32 %v1915, 0.0
        %v2044 = vmax.f32 %v1916, 0.0
        %v2045 = vmax.f32 %v1917, 0.0
        %v2046 = vmax.f32 %v1918, 0.0
        %v2047 = vmax.f32 %v1919, 0.0
        %v2048 = vmax.f32 %v1920, 0.0
        %v2049 = vmax.f32 %v1921, 0.0
        %v2050 = vmax.f32 %v1922, 0.0
        %v2051 = vmax.f32 %v1923, 0.0
        %v2052 = vmax.f32 %v1924, 0.0
        %v2053 = vmax.f32 %v1925, 0.0
        %v2054 = vmax.f32 %v1926, 0.0
        %v2055 = vmax.f32 %v1927, 0.0
        %v2056 = vmax.f32 %v1928, 0.0
        %v2057 = vmax.f32 %v1929, 0.0
        %v2058 = vmax.f32 %v1930, 0.0
        %v2059 = vmax.f32 %v1931, 0.0
        %v2060 = vmax.f32 %v1932, 0.0
        %v2061 = vmax.f32 %v1933, 0.0
        %v2062 = vmax.f32 %v1934, 0.0
        %v2063 = vmax.f32 %v1935, 0.0
        %v2064 = vmax.f32 %v1936, 0.0
        %v2065 = vmax.f32 %v1937, 0.0
        %v2066 = vmax.f32 %v1938, 0.0
        %v2067 = vmax.f32 %v1939, 0.0
        %v2068 = vmax.f32 %v1940, 0.0
        %v2069 = vmax.f32 %v1941, 0.0
        %v2070 = vmax.f32 %v1942, 0.0
        %v2071 = vmax.f32 %v1943, 0.0
        %v2072 = vmax.f32 %v1944, 0.0
        %v2073 = vmax.f32 %v1945, 0.0
        %v2074 = vmax.f32 %v1946, 0.0
        %v2075 = vmax.f32 %v1947, 0.0
        %v2076 = vmax.f32 %v1948, 0.0
        %v2077 = vmax.f32 %v1949, 0.0
        %v2078 = vmax.f32 %v1950, 0.0
        %v2079 = vmax.f32 %v1951, 0.0
        %v2080 = vmax.f32 %v1952, 0.0
        %v2081 = vmax.f32 %v1953, 0.0
        %v2082 = vmax.f32 %v1954, 0.0
        %v2083 = vmax.f32 %v1955, 0.0
        %v2084 = vmax.f32 %v1956, 0.0
        %v2085 = vmax.f32 %v1957, 0.0
        %v2086 = vmax.f32 %v1958, 0.0
        %v2087 = vmax.f32 %v1959, 0.0
        %v2088 = vmax.f32 %v1960, 0.0
        %v2089 = vmax.f32 %v1961, 0.0
        %v2090 = vmax.f32 %v1962, 0.0
        %v2091 = vmax.f32 %v1963, 0.0
        %v2092 = vmax.f32 %v1964, 0.0
        %v2093 = vmax.f32 %v1965, 0.0
        %v2094 = vmax.f32 %v1966, 0.0
        %v2095 = vmax.f32 %v1967, 0.0
        %v2096 = vmax.f32 %v1968, 0.0
        %v2097 = vmax.f32 %v1969, 0.0
        %v2098 = vmax.f32 %v1970, 0.0
        %v2099 = vmax.f32 %v1971, 0.0
        %v2100 = vmax.f32 %v1972, 0.0
        %v2101 = vmax.f32 %v1973, 0.0
        %v2102 = vmax.f32 %v1974, 0.0
        %v2103 = vmax.f32 %v1975, 0.0
        %v2104 = vmax.f32 %v1976, 0.0
        %v2105 = vmax.f32 %v1977, 0.0
        %v2106 = vmax.f32 %v1978, 0.0
        %v2107 = vmax.f32 %v1979, 0.0
        %v2108 = vmax.f32 %v1980, 0.0
        %v2109 = vmax.f32 %v1981, 0.0
        %v2110 = vmax.f32 %v1982, 0.0
        %v2111 = vmax.f32 %v1983, 0.0
        %v2112 = vmax.f32 %v1984, 0.0
        %v2113 = vmax.f32 %v1985, 0.0
        %v2114 = vmax.f32 %v1986, 0.0
        %v2115 = vmax.f32 %v1987, 0.0
        %v2116 = vmax.f32 %v1988, 0.0
        %v2117 = vmax.f32 %v1989, 0.0
        %v2118 = vmax.f32 %v1990, 0.0
        %v2119 = vmax.f32 %v1991, 0.0
        %v2120 = vmax.f32 %v1992, 0.0
        %v2121 = vmax.f32 %v1993, 0.0
        %v2122 = vmax.f32 %v1994, 0.0
        %v2123 = vmax.f32 %v1995, 0.0
        %v2124 = vmax.f32 %v1996, 0.0
        %v2125 = vmax.f32 %v1997, 0.0
        %v2126 = vmax.f32 %v1998, 0.0
        %v2127 = vmax.f32 %v1999, 0.0
        %v2128 = vmax.f32 %v2000, 0.0
        %v2129 = vmax.f32 %v2001, 0.0
        %v2130 = vmax.f32 %v2002, 0.0
        %v2131 = vmax.f32 %v2003, 0.0
        %v2132 = vmax.f32 %v2004, 0.0
        %v2133 = vmax.f32 %v2005, 0.0
        %v2134 = vmax.f32 %v2006, 0.0
        %v2135 = vmax.f32 %v2007, 0.0
        %v2136 = vmax.f32 %v2008, 0.0
        %v2137 = vmax.f32 %v2009, 0.0
        %v2138 = vmax.f32 %v2010, 0.0
        %v2139 = vmax.f32 %v2011, 0.0
        %v2140 = vmax.f32 %v2012, 0.0
        %v2141 = vmax.f32 %v2013, 0.0
        %v2142 = vmax.f32 %v2014, 0.0
        %v2143 = vmax.f32 %v2015, 0.0
        %v2144 = vmax.f32 %v2016, 0.0
        %v2145 = vmax.f32 %v2017, 0.0
        %v2146 = vmax.f32 %v2018, 0.0
        %v2147 = vmax.f32 %v2019, 0.0
        %v2148 = vmax.f32 %v2020, 0.0
        %v2149 = vmax.f32 %v2021, 0.0
        %v2150 = vmax.f32 %v2022, 0.0
        %v2151 = vmax.f32 %v2023, 0.0
        %v2152 = vmax.f32 %v2024, 0.0
        %v2153 = vmax.f32 %v2025, 0.0
        %v2154 = vmax.f32 %v2026, 0.0
        %v2155 = vpack.c.bf16 %v2028, %v2027
        %v2156 = vpack.c.bf16 %v2030, %v2029
        %v2157 = vpack.c.bf16 %v2032, %v2031
        %v2158 = vpack.c.bf16 %v2034, %v2033
        %v2159 = vpack.c.bf16 %v2036, %v2035
        %v2160 = vpack.c.bf16 %v2038, %v2037
        %v2161 = vpack.c.bf16 %v2040, %v2039
        %v2162 = vpack.c.bf16 %v2042, %v2041
        %v2163 = vpack.c.bf16 %v2044, %v2043
        %v2164 = vpack.c.bf16 %v2046, %v2045
        %v2165 = vpack.c.bf16 %v2048, %v2047
        %v2166 = vpack.c.bf16 %v2050, %v2049
        %v2167 = vpack.c.bf16 %v2052, %v2051
        %v2168 = vpack.c.bf16 %v2054, %v2053
        %v2169 = vpack.c.bf16 %v2056, %v2055
        %v2170 = vpack.c.bf16 %v2058, %v2057
        %v2171 = vpack.c.bf16 %v2060, %v2059
        %v2172 = vpack.c.bf16 %v2062, %v2061
        %v2173 = vpack.c.bf16 %v2064, %v2063
        %v2174 = vpack.c.bf16 %v2066, %v2065
        %v2175 = vpack.c.bf16 %v2068, %v2067
        %v2176 = vpack.c.bf16 %v2070, %v2069
        %v2177 = vpack.c.bf16 %v2072, %v2071
        %v2178 = vpack.c.bf16 %v2074, %v2073
        %v2179 = vpack.c.bf16 %v2076, %v2075
        %v2180 = vpack.c.bf16 %v2078, %v2077
        %v2181 = vpack.c.bf16 %v2080, %v2079
        %v2182 = vpack.c.bf16 %v2082, %v2081
        %v2183 = vpack.c.bf16 %v2084, %v2083
        %v2184 = vpack.c.bf16 %v2086, %v2085
        %v2185 = vpack.c.bf16 %v2088, %v2087
        %v2186 = vpack.c.bf16 %v2090, %v2089
        %v2187 = vpack.c.bf16 %v2092, %v2091
        %v2188 = vpack.c.bf16 %v2094, %v2093
        %v2189 = vpack.c.bf16 %v2096, %v2095
        %v2190 = vpack.c.bf16 %v2098, %v2097
        %v2191 = vpack.c.bf16 %v2100, %v2099
        %v2192 = vpack.c.bf16 %v2102, %v2101
        %v2193 = vpack.c.bf16 %v2104, %v2103
        %v2194 = vpack.c.bf16 %v2106, %v2105
        %v2195 = vpack.c.bf16 %v2108, %v2107
        %v2196 = vpack.c.bf16 %v2110, %v2109
        %v2197 = vpack.c.bf16 %v2112, %v2111
        %v2198 = vpack.c.bf16 %v2114, %v2113
        %v2199 = vpack.c.bf16 %v2116, %v2115
        %v2200 = vpack.c.bf16 %v2118, %v2117
        %v2201 = vpack.c.bf16 %v2120, %v2119
        %v2202 = vpack.c.bf16 %v2122, %v2121
        %v2203 = vpack.c.bf16 %v2124, %v2123
        %v2204 = vpack.c.bf16 %v2126, %v2125
        %v2205 = vpack.c.bf16 %v2128, %v2127
        %v2206 = vpack.c.bf16 %v2130, %v2129
        %v2207 = vpack.c.bf16 %v2132, %v2131
        %v2208 = vpack.c.bf16 %v2134, %v2133
        %v2209 = vpack.c.bf16 %v2136, %v2135
        %v2210 = vpack.c.bf16 %v2138, %v2137
        %v2211 = vpack.c.bf16 %v2140, %v2139
        %v2212 = vpack.c.bf16 %v2142, %v2141
        %v2213 = vpack.c.bf16 %v2144, %v2143
        %v2214 = vpack.c.bf16 %v2146, %v2145
        %v2215 = vpack.c.bf16 %v2148, %v2147
        %v2216 = vpack.c.bf16 %v2150, %v2149
        %v2217 = vpack.c.bf16 %v2152, %v2151
        %v2218 = vpack.c.bf16 %v2154, %v2153
        %v2283 = vunpack.c.l.b16 %v2155
        %v2284 = vunpack.c.h.b16 %v2155
        %v2285 = vunpack.c.l.b16 %v2156
        %v2286 = vunpack.c.h.b16 %v2156
        %v2287 = vunpack.c.l.b16 %v2157
        %v2288 = vunpack.c.h.b16 %v2157
        %v2289 = vunpack.c.l.b16 %v2158
        %v2290 = vunpack.c.h.b16 %v2158
        %v2291 = vunpack.c.l.b16 %v2159
        %v2292 = vunpack.c.h.b16 %v2159
        %v2293 = vunpack.c.l.b16 %v2160
        %v2294 = vunpack.c.h.b16 %v2160
        %v2295 = vunpack.c.l.b16 %v2161
        %v2296 = vunpack.c.h.b16 %v2161
        %v2297 = vunpack.c.l.b16 %v2162
        %v2298 = vunpack.c.h.b16 %v2162
        %v2299 = vunpack.c.l.b16 %v2163
        %v2300 = vunpack.c.h.b16 %v2163
        %v2301 = vunpack.c.l.b16 %v2164
        %v2302 = vunpack.c.h.b16 %v2164
        %v2303 = vunpack.c.l.b16 %v2165
        %v2304 = vunpack.c.h.b16 %v2165
        %v2305 = vunpack.c.l.b16 %v2166
        %v2306 = vunpack.c.h.b16 %v2166
        %v2307 = vunpack.c.l.b16 %v2167
        %v2308 = vunpack.c.h.b16 %v2167
        %v2309 = vunpack.c.l.b16 %v2168
        %v2310 = vunpack.c.h.b16 %v2168
        %v2311 = vunpack.c.l.b16 %v2169
        %v2312 = vunpack.c.h.b16 %v2169
        %v2313 = vunpack.c.l.b16 %v2170
        %v2314 = vunpack.c.h.b16 %v2170
        %v2315 = vunpack.c.l.b16 %v2171
        %v2316 = vunpack.c.h.b16 %v2171
        %v2317 = vunpack.c.l.b16 %v2172
        %v2318 = vunpack.c.h.b16 %v2172
        %v2319 = vunpack.c.l.b16 %v2173
        %v2320 = vunpack.c.h.b16 %v2173
        %v2321 = vunpack.c.l.b16 %v2174
        %v2322 = vunpack.c.h.b16 %v2174
        %v2323 = vunpack.c.l.b16 %v2175
        %v2324 = vunpack.c.h.b16 %v2175
        %v2325 = vunpack.c.l.b16 %v2176
        %v2326 = vunpack.c.h.b16 %v2176
        %v2327 = vunpack.c.l.b16 %v2177
        %v2328 = vunpack.c.h.b16 %v2177
        %v2329 = vunpack.c.l.b16 %v2178
        %v2330 = vunpack.c.h.b16 %v2178
        %v2331 = vunpack.c.l.b16 %v2179
        %v2332 = vunpack.c.h.b16 %v2179
        %v2333 = vunpack.c.l.b16 %v2180
        %v2334 = vunpack.c.h.b16 %v2180
        %v2335 = vunpack.c.l.b16 %v2181
        %v2336 = vunpack.c.h.b16 %v2181
        %v2337 = vunpack.c.l.b16 %v2182
        %v2338 = vunpack.c.h.b16 %v2182
        %v2339 = vunpack.c.l.b16 %v2183
        %v2340 = vunpack.c.h.b16 %v2183
        %v2341 = vunpack.c.l.b16 %v2184
        %v2342 = vunpack.c.h.b16 %v2184
        %v2343 = vunpack.c.l.b16 %v2185
        %v2344 = vunpack.c.h.b16 %v2185
        %v2345 = vunpack.c.l.b16 %v2186
        %v2346 = vunpack.c.h.b16 %v2186
        %v2347 = vunpack.c.l.b16 %v2187
        %v2348 = vunpack.c.h.b16 %v2187
        %v2349 = vunpack.c.l.b16 %v2188
        %v2350 = vunpack.c.h.b16 %v2188
        %v2351 = vunpack.c.l.b16 %v2189
        %v2352 = vunpack.c.h.b16 %v2189
        %v2353 = vunpack.c.l.b16 %v2190
        %v2354 = vunpack.c.h.b16 %v2190
        %v2355 = vunpack.c.l.b16 %v2191
        %v2356 = vunpack.c.h.b16 %v2191
        %v2357 = vunpack.c.l.b16 %v2192
        %v2358 = vunpack.c.h.b16 %v2192
        %v2359 = vunpack.c.l.b16 %v2193
        %v2360 = vunpack.c.h.b16 %v2193
        %v2361 = vunpack.c.l.b16 %v2194
        %v2362 = vunpack.c.h.b16 %v2194
        %v2363 = vunpack.c.l.b16 %v2195
        %v2364 = vunpack.c.h.b16 %v2195
        %v2365 = vunpack.c.l.b16 %v2196
        %v2366 = vunpack.c.h.b16 %v2196
        %v2367 = vunpack.c.l.b16 %v2197
        %v2368 = vunpack.c.h.b16 %v2197
        %v2369 = vunpack.c.l.b16 %v2198
        %v2370 = vunpack.c.h.b16 %v2198
        %v2371 = vunpack.c.l.b16 %v2199
        %v2372 = vunpack.c.h.b16 %v2199
        %v2373 = vunpack.c.l.b16 %v2200
        %v2374 = vunpack.c.h.b16 %v2200
        %v2375 = vunpack.c.l.b16 %v2201
        %v2376 = vunpack.c.h.b16 %v2201
        %v2377 = vunpack.c.l.b16 %v2202
        %v2378 = vunpack.c.h.b16 %v2202
        %v2379 = vunpack.c.l.b16 %v2203
        %v2380 = vunpack.c.h.b16 %v2203
        %v2381 = vunpack.c.l.b16 %v2204
        %v2382 = vunpack.c.h.b16 %v2204
        %v2383 = vunpack.c.l.b16 %v2205
        %v2384 = vunpack.c.h.b16 %v2205
        %v2385 = vunpack.c.l.b16 %v2206
        %v2386 = vunpack.c.h.b16 %v2206
        %v2387 = vunpack.c.l.b16 %v2207
        %v2388 = vunpack.c.h.b16 %v2207
        %v2389 = vunpack.c.l.b16 %v2208
        %v2390 = vunpack.c.h.b16 %v2208
        %v2391 = vunpack.c.l.b16 %v2209
        %v2392 = vunpack.c.h.b16 %v2209
        %v2393 = vunpack.c.l.b16 %v2210
        %v2394 = vunpack.c.h.b16 %v2210
        %v2395 = vunpack.c.l.b16 %v2211
        %v2396 = vunpack.c.h.b16 %v2211
        %v2397 = vunpack.c.l.b16 %v2212
        %v2398 = vunpack.c.h.b16 %v2212
        %v2399 = vunpack.c.l.b16 %v2213
        %v2400 = vunpack.c.h.b16 %v2213
        %v2401 = vunpack.c.l.b16 %v2214
        %v2402 = vunpack.c.h.b16 %v2214
        %v2403 = vunpack.c.l.b16 %v2215
        %v2404 = vunpack.c.h.b16 %v2215
        %v2405 = vunpack.c.l.b16 %v2216
        %v2406 = vunpack.c.h.b16 %v2216
        %v2407 = vunpack.c.l.b16 %v2217
        %v2408 = vunpack.c.h.b16 %v2217
        %v2409 = vunpack.c.l.b16 %v2218
        %v2410 = vunpack.c.h.b16 %v2218
        %v2411 = vpack.c.b16 %v2283, %v2283
        %v2412 = vpack.c.b16 %v2284, %v2284
        %v2413 = vpack.c.b16 %v2285, %v2285
        %v2414 = vpack.c.b16 %v2286, %v2286
        %v2415 = vpack.c.b16 %v2287, %v2287
        %v2416 = vpack.c.b16 %v2288, %v2288
        %v2417 = vpack.c.b16 %v2289, %v2289
        %v2418 = vpack.c.b16 %v2290, %v2290
        %v2419 = vpack.c.b16 %v2291, %v2291
        %v2420 = vpack.c.b16 %v2292, %v2292
        %v2421 = vpack.c.b16 %v2293, %v2293
        %v2422 = vpack.c.b16 %v2294, %v2294
        %v2423 = vpack.c.b16 %v2295, %v2295
        %v2424 = vpack.c.b16 %v2296, %v2296
        %v2425 = vpack.c.b16 %v2297, %v2297
        %v2426 = vpack.c.b16 %v2298, %v2298
        %v2427 = vpack.c.b16 %v2299, %v2299
        %v2428 = vpack.c.b16 %v2300, %v2300
        %v2429 = vpack.c.b16 %v2301, %v2301
        %v2430 = vpack.c.b16 %v2302, %v2302
        %v2431 = vpack.c.b16 %v2303, %v2303
        %v2432 = vpack.c.b16 %v2304, %v2304
        %v2433 = vpack.c.b16 %v2305, %v2305
        %v2434 = vpack.c.b16 %v2306, %v2306
        %v2435 = vpack.c.b16 %v2307, %v2307
        %v2436 = vpack.c.b16 %v2308, %v2308
        %v2437 = vpack.c.b16 %v2309, %v2309
        %v2438 = vpack.c.b16 %v2310, %v2310
        %v2439 = vpack.c.b16 %v2311, %v2311
        %v2440 = vpack.c.b16 %v2312, %v2312
        %v2441 = vpack.c.b16 %v2313, %v2313
        %v2442 = vpack.c.b16 %v2314, %v2314
        %v2443 = vpack.c.b16 %v2315, %v2315
        %v2444 = vpack.c.b16 %v2316, %v2316
        %v2445 = vpack.c.b16 %v2317, %v2317
        %v2446 = vpack.c.b16 %v2318, %v2318
        %v2447 = vpack.c.b16 %v2319, %v2319
        %v2448 = vpack.c.b16 %v2320, %v2320
        %v2449 = vpack.c.b16 %v2321, %v2321
        %v2450 = vpack.c.b16 %v2322, %v2322
        %v2451 = vpack.c.b16 %v2323, %v2323
        %v2452 = vpack.c.b16 %v2324, %v2324
        %v2453 = vpack.c.b16 %v2325, %v2325
        %v2454 = vpack.c.b16 %v2326, %v2326
        %v2455 = vpack.c.b16 %v2327, %v2327
        %v2456 = vpack.c.b16 %v2328, %v2328
        %v2457 = vpack.c.b16 %v2329, %v2329
        %v2458 = vpack.c.b16 %v2330, %v2330
        %v2459 = vpack.c.b16 %v2331, %v2331
        %v2460 = vpack.c.b16 %v2332, %v2332
        %v2461 = vpack.c.b16 %v2333, %v2333
        %v2462 = vpack.c.b16 %v2334, %v2334
        %v2463 = vpack.c.b16 %v2335, %v2335
        %v2464 = vpack.c.b16 %v2336, %v2336
        %v2465 = vpack.c.b16 %v2337, %v2337
        %v2466 = vpack.c.b16 %v2338, %v2338
        %v2467 = vpack.c.b16 %v2339, %v2339
        %v2468 = vpack.c.b16 %v2340, %v2340
        %v2469 = vpack.c.b16 %v2341, %v2341
        %v2470 = vpack.c.b16 %v2342, %v2342
        %v2471 = vpack.c.b16 %v2343, %v2343
        %v2472 = vpack.c.b16 %v2344, %v2344
        %v2473 = vpack.c.b16 %v2345, %v2345
        %v2474 = vpack.c.b16 %v2346, %v2346
        %v2475 = vpack.c.b16 %v2347, %v2347
        %v2476 = vpack.c.b16 %v2348, %v2348
        %v2477 = vpack.c.b16 %v2349, %v2349
        %v2478 = vpack.c.b16 %v2350, %v2350
        %v2479 = vpack.c.b16 %v2351, %v2351
        %v2480 = vpack.c.b16 %v2352, %v2352
        %v2481 = vpack.c.b16 %v2353, %v2353
        %v2482 = vpack.c.b16 %v2354, %v2354
        %v2483 = vpack.c.b16 %v2355, %v2355
        %v2484 = vpack.c.b16 %v2356, %v2356
        %v2485 = vpack.c.b16 %v2357, %v2357
        %v2486 = vpack.c.b16 %v2358, %v2358
        %v2487 = vpack.c.b16 %v2359, %v2359
        %v2488 = vpack.c.b16 %v2360, %v2360
        %v2489 = vpack.c.b16 %v2361, %v2361
        %v2490 = vpack.c.b16 %v2362, %v2362
        %v2491 = vpack.c.b16 %v2363, %v2363
        %v2492 = vpack.c.b16 %v2364, %v2364
        %v2493 = vpack.c.b16 %v2365, %v2365
        %v2494 = vpack.c.b16 %v2366, %v2366
        %v2495 = vpack.c.b16 %v2367, %v2367
        %v2496 = vpack.c.b16 %v2368, %v2368
        %v2497 = vpack.c.b16 %v2369, %v2369
        %v2498 = vpack.c.b16 %v2370, %v2370
        %v2499 = vpack.c.b16 %v2371, %v2371
        %v2500 = vpack.c.b16 %v2372, %v2372
        %v2501 = vpack.c.b16 %v2373, %v2373
        %v2502 = vpack.c.b16 %v2374, %v2374
        %v2503 = vpack.c.b16 %v2375, %v2375
        %v2504 = vpack.c.b16 %v2376, %v2376
        %v2505 = vpack.c.b16 %v2377, %v2377
        %v2506 = vpack.c.b16 %v2378, %v2378
        %v2507 = vpack.c.b16 %v2379, %v2379
        %v2508 = vpack.c.b16 %v2380, %v2380
        %v2509 = vpack.c.b16 %v2381, %v2381
        %v2510 = vpack.c.b16 %v2382, %v2382
        %v2511 = vpack.c.b16 %v2383, %v2383
        %v2512 = vpack.c.b16 %v2384, %v2384
        %v2513 = vpack.c.b16 %v2385, %v2385
        %v2514 = vpack.c.b16 %v2386, %v2386
        %v2515 = vpack.c.b16 %v2387, %v2387
        %v2516 = vpack.c.b16 %v2388, %v2388
        %v2517 = vpack.c.b16 %v2389, %v2389
        %v2518 = vpack.c.b16 %v2390, %v2390
        %v2519 = vpack.c.b16 %v2391, %v2391
        %v2520 = vpack.c.b16 %v2392, %v2392
        %v2521 = vpack.c.b16 %v2393, %v2393
        %v2522 = vpack.c.b16 %v2394, %v2394
        %v2523 = vpack.c.b16 %v2395, %v2395
        %v2524 = vpack.c.b16 %v2396, %v2396
        %v2525 = vpack.c.b16 %v2397, %v2397
        %v2526 = vpack.c.b16 %v2398, %v2398
        %v2527 = vpack.c.b16 %v2399, %v2399
        %v2528 = vpack.c.b16 %v2400, %v2400
        %v2529 = vpack.c.b16 %v2401, %v2401
        %v2530 = vpack.c.b16 %v2402, %v2402
        %v2531 = vpack.c.b16 %v2403, %v2403
        %v2532 = vpack.c.b16 %v2404, %v2404
        %v2533 = vpack.c.b16 %v2405, %v2405
        %v2534 = vpack.c.b16 %v2406, %v2406
        %v2535 = vpack.c.b16 %v2407, %v2407
        %v2536 = vpack.c.b16 %v2408, %v2408
        %v2537 = vpack.c.b16 %v2409, %v2409
        %v2538 = vpack.c.b16 %v2410, %v2410
        %vm2667 = vcmask 519168
        %2668 = vst.msk [vmem:[%s208] sm:$0xf] %vm2667, %v2411
        %2669 = vst.msk [vmem:[%s208 + $0x4] sm:$0xf] %vm2667, %v2412
        %2670 = vst.msk [vmem:[%s208 + $0x8] sm:$0xf] %vm2667, %v2413
        %2671 = vst.msk [vmem:[%s208 + $0xc] sm:$0xf] %vm2667, %v2414
        %2672 = vst.msk [vmem:[%s208 + $0x10] sm:$0xf] %vm2667, %v2415
        %2673 = vst.msk [vmem:[%s208 + $0x14] sm:$0xf] %vm2667, %v2416
        %2674 = vst.msk [vmem:[%s208 + $0x18] sm:$0xf] %vm2667, %v2417
        %2675 = vst.msk [vmem:[%s208 + $0x1c] sm:$0xf] %vm2667, %v2418
        %2676 = vst.msk [vmem:[%s208 + $0x20] sm:$0xf] %vm2667, %v2419
        %2677 = vst.msk [vmem:[%s208 + $0x24] sm:$0xf] %vm2667, %v2420
        %2678 = vst.msk [vmem:[%s208 + $0x28] sm:$0xf] %vm2667, %v2421
        %2679 = vst.msk [vmem:[%s208 + $0x2c] sm:$0xf] %vm2667, %v2422
        %2680 = vst.msk [vmem:[%s208 + $0x30] sm:$0xf] %vm2667, %v2423
        %2681 = vst.msk [vmem:[%s208 + $0x34] sm:$0xf] %vm2667, %v2424
        %2682 = vst.msk [vmem:[%s208 + $0x38] sm:$0xf] %vm2667, %v2425
        %2683 = vst.msk [vmem:[%s208 + $0x3c] sm:$0xf] %vm2667, %v2426
        %2684 = vst.msk [vmem:[%s208 + $0x40] sm:$0xf] %vm2667, %v2427
        %2685 = vst.msk [vmem:[%s208 + $0x44] sm:$0xf] %vm2667, %v2428
        %2686 = vst.msk [vmem:[%s208 + $0x48] sm:$0xf] %vm2667, %v2429
        %2687 = vst.msk [vmem:[%s208 + $0x4c] sm:$0xf] %vm2667, %v2430
        %2688 = vst.msk [vmem:[%s208 + $0x50] sm:$0xf] %vm2667, %v2431
        %2689 = vst.msk [vmem:[%s208 + $0x54] sm:$0xf] %vm2667, %v2432
        %2690 = vst.msk [vmem:[%s208 + $0x58] sm:$0xf] %vm2667, %v2433
        %2691 = vst.msk [vmem:[%s208 + $0x5c] sm:$0xf] %vm2667, %v2434
        %2692 = vst.msk [vmem:[%s208 + $0x60] sm:$0xf] %vm2667, %v2435
        %2693 = vst.msk [vmem:[%s208 + $0x64] sm:$0xf] %vm2667, %v2436
        %2694 = vst.msk [vmem:[%s208 + $0x68] sm:$0xf] %vm2667, %v2437
        %2695 = vst.msk [vmem:[%s208 + $0x6c] sm:$0xf] %vm2667, %v2438
        %2696 = vst.msk [vmem:[%s208 + $0x70] sm:$0xf] %vm2667, %v2439
        %2697 = vst.msk [vmem:[%s208 + $0x74] sm:$0xf] %vm2667, %v2440
        %2698 = vst.msk [vmem:[%s208 + $0x78] sm:$0xf] %vm2667, %v2441
        %2699 = vst.msk [vmem:[%s208 + $0x7c] sm:$0xf] %vm2667, %v2442
        %2700 = vst.msk [vmem:[%s208 + $0x80] sm:$0xf] %vm2667, %v2443
        %2701 = vst.msk [vmem:[%s208 + $0x84] sm:$0xf] %vm2667, %v2444
        %2702 = vst.msk [vmem:[%s208 + $0x88] sm:$0xf] %vm2667, %v2445
        %2703 = vst.msk [vmem:[%s208 + $0x8c] sm:$0xf] %vm2667, %v2446
        %2704 = vst.msk [vmem:[%s208 + $0x90] sm:$0xf] %vm2667, %v2447
        %2705 = vst.msk [vmem:[%s208 + $0x94] sm:$0xf] %vm2667, %v2448
        %2706 = vst.msk [vmem:[%s208 + $0x98] sm:$0xf] %vm2667, %v2449
        %2707 = vst.msk [vmem:[%s208 + $0x9c] sm:$0xf] %vm2667, %v2450
        %2708 = vst.msk [vmem:[%s208 + $0xa0] sm:$0xf] %vm2667, %v2451
        %2709 = vst.msk [vmem:[%s208 + $0xa4] sm:$0xf] %vm2667, %v2452
        %2710 = vst.msk [vmem:[%s208 + $0xa8] sm:$0xf] %vm2667, %v2453
        %2711 = vst.msk [vmem:[%s208 + $0xac] sm:$0xf] %vm2667, %v2454
        %2712 = vst.msk [vmem:[%s208 + $0xb0] sm:$0xf] %vm2667, %v2455
        %2713 = vst.msk [vmem:[%s208 + $0xb4] sm:$0xf] %vm2667, %v2456
        %2714 = vst.msk [vmem:[%s208 + $0xb8] sm:$0xf] %vm2667, %v2457
        %2715 = vst.msk [vmem:[%s208 + $0xbc] sm:$0xf] %vm2667, %v2458
        %2716 = vst.msk [vmem:[%s208 + $0xc0] sm:$0xf] %vm2667, %v2459
        %2717 = vst.msk [vmem:[%s208 + $0xc4] sm:$0xf] %vm2667, %v2460
        %2718 = vst.msk [vmem:[%s208 + $0xc8] sm:$0xf] %vm2667, %v2461
        %2719 = vst.msk [vmem:[%s208 + $0xcc] sm:$0xf] %vm2667, %v2462
        %2720 = vst.msk [vmem:[%s208 + $0xd0] sm:$0xf] %vm2667, %v2463
        %2721 = vst.msk [vmem:[%s208 + $0xd4] sm:$0xf] %vm2667, %v2464
        %2722 = vst.msk [vmem:[%s208 + $0xd8] sm:$0xf] %vm2667, %v2465
        %2723 = vst.msk [vmem:[%s208 + $0xdc] sm:$0xf] %vm2667, %v2466
        %2724 = vst.msk [vmem:[%s208 + $0xe0] sm:$0xf] %vm2667, %v2467
        %2725 = vst.msk [vmem:[%s208 + $0xe4] sm:$0xf] %vm2667, %v2468
        %2726 = vst.msk [vmem:[%s208 + $0xe8] sm:$0xf] %vm2667, %v2469
        %2727 = vst.msk [vmem:[%s208 + $0xec] sm:$0xf] %vm2667, %v2470
        %2728 = vst.msk [vmem:[%s208 + $0xf0] sm:$0xf] %vm2667, %v2471
        %2729 = vst.msk [vmem:[%s208 + $0xf4] sm:$0xf] %vm2667, %v2472
        %2730 = vst.msk [vmem:[%s208 + $0xf8] sm:$0xf] %vm2667, %v2473
        %2731 = vst.msk [vmem:[%s208 + $0xfc] sm:$0xf] %vm2667, %v2474
        %2732 = vst.msk [vmem:[%s208 + $0x100] sm:$0xf] %vm2667, %v2475
        %2733 = vst.msk [vmem:[%s208 + $0x104] sm:$0xf] %vm2667, %v2476
        %2734 = vst.msk [vmem:[%s208 + $0x108] sm:$0xf] %vm2667, %v2477
        %2735 = vst.msk [vmem:[%s208 + $0x10c] sm:$0xf] %vm2667, %v2478
        %2736 = vst.msk [vmem:[%s208 + $0x110] sm:$0xf] %vm2667, %v2479
        %2737 = vst.msk [vmem:[%s208 + $0x114] sm:$0xf] %vm2667, %v2480
        %2738 = vst.msk [vmem:[%s208 + $0x118] sm:$0xf] %vm2667, %v2481
        %2739 = vst.msk [vmem:[%s208 + $0x11c] sm:$0xf] %vm2667, %v2482
        %2740 = vst.msk [vmem:[%s208 + $0x120] sm:$0xf] %vm2667, %v2483
        %2741 = vst.msk [vmem:[%s208 + $0x124] sm:$0xf] %vm2667, %v2484
        %2742 = vst.msk [vmem:[%s208 + $0x128] sm:$0xf] %vm2667, %v2485
        %2743 = vst.msk [vmem:[%s208 + $0x12c] sm:$0xf] %vm2667, %v2486
        %2744 = vst.msk [vmem:[%s208 + $0x130] sm:$0xf] %vm2667, %v2487
        %2745 = vst.msk [vmem:[%s208 + $0x134] sm:$0xf] %vm2667, %v2488
        %2746 = vst.msk [vmem:[%s208 + $0x138] sm:$0xf] %vm2667, %v2489
        %2747 = vst.msk [vmem:[%s208 + $0x13c] sm:$0xf] %vm2667, %v2490
        %2748 = vst.msk [vmem:[%s208 + $0x140] sm:$0xf] %vm2667, %v2491
        %2749 = vst.msk [vmem:[%s208 + $0x144] sm:$0xf] %vm2667, %v2492
        %2750 = vst.msk [vmem:[%s208 + $0x148] sm:$0xf] %vm2667, %v2493
        %2751 = vst.msk [vmem:[%s208 + $0x14c] sm:$0xf] %vm2667, %v2494
        %2752 = vst.msk [vmem:[%s208 + $0x150] sm:$0xf] %vm2667, %v2495
        %2753 = vst.msk [vmem:[%s208 + $0x154] sm:$0xf] %vm2667, %v2496
        %2754 = vst.msk [vmem:[%s208 + $0x158] sm:$0xf] %vm2667, %v2497
        %2755 = vst.msk [vmem:[%s208 + $0x15c] sm:$0xf] %vm2667, %v2498
        %2756 = vst.msk [vmem:[%s208 + $0x160] sm:$0xf] %vm2667, %v2499
        %2757 = vst.msk [vmem:[%s208 + $0x164] sm:$0xf] %vm2667, %v2500
        %2758 = vst.msk [vmem:[%s208 + $0x168] sm:$0xf] %vm2667, %v2501
        %2759 = vst.msk [vmem:[%s208 + $0x16c] sm:$0xf] %vm2667, %v2502
        %2760 = vst.msk [vmem:[%s208 + $0x170] sm:$0xf] %vm2667, %v2503
        %2761 = vst.msk [vmem:[%s208 + $0x174] sm:$0xf] %vm2667, %v2504
        %2762 = vst.msk [vmem:[%s208 + $0x178] sm:$0xf] %vm2667, %v2505
        %2763 = vst.msk [vmem:[%s208 + $0x17c] sm:$0xf] %vm2667, %v2506
        %2764 = vst.msk [vmem:[%s208 + $0x180] sm:$0xf] %vm2667, %v2507
        %2765 = vst.msk [vmem:[%s208 + $0x184] sm:$0xf] %vm2667, %v2508
        %2766 = vst.msk [vmem:[%s208 + $0x188] sm:$0xf] %vm2667, %v2509
        %2767 = vst.msk [vmem:[%s208 + $0x18c] sm:$0xf] %vm2667, %v2510
        %2768 = vst.msk [vmem:[%s208 + $0x190] sm:$0xf] %vm2667, %v2511
        %2769 = vst.msk [vmem:[%s208 + $0x194] sm:$0xf] %vm2667, %v2512
        %2770 = vst.msk [vmem:[%s208 + $0x198] sm:$0xf] %vm2667, %v2513
        %2771 = vst.msk [vmem:[%s208 + $0x19c] sm:$0xf] %vm2667, %v2514
        %2772 = vst.msk [vmem:[%s208 + $0x1a0] sm:$0xf] %vm2667, %v2515
        %2773 = vst.msk [vmem:[%s208 + $0x1a4] sm:$0xf] %vm2667, %v2516
        %2774 = vst.msk [vmem:[%s208 + $0x1a8] sm:$0xf] %vm2667, %v2517
        %2775 = vst.msk [vmem:[%s208 + $0x1ac] sm:$0xf] %vm2667, %v2518
        %2776 = vst.msk [vmem:[%s208 + $0x1b0] sm:$0xf] %vm2667, %v2519
        %2777 = vst.msk [vmem:[%s208 + $0x1b4] sm:$0xf] %vm2667, %v2520
        %2778 = vst.msk [vmem:[%s208 + $0x1b8] sm:$0xf] %vm2667, %v2521
        %2779 = vst.msk [vmem:[%s208 + $0x1bc] sm:$0xf] %vm2667, %v2522
        %2780 = vst.msk [vmem:[%s208 + $0x1c0] sm:$0xf] %vm2667, %v2523
        %2781 = vst.msk [vmem:[%s208 + $0x1c4] sm:$0xf] %vm2667, %v2524
        %2782 = vst.msk [vmem:[%s208 + $0x1c8] sm:$0xf] %vm2667, %v2525
        %2783 = vst.msk [vmem:[%s208 + $0x1cc] sm:$0xf] %vm2667, %v2526
        %2784 = vst.msk [vmem:[%s208 + $0x1d0] sm:$0xf] %vm2667, %v2527
        %2785 = vst.msk [vmem:[%s208 + $0x1d4] sm:$0xf] %vm2667, %v2528
        %2786 = vst.msk [vmem:[%s208 + $0x1d8] sm:$0xf] %vm2667, %v2529
        %2787 = vst.msk [vmem:[%s208 + $0x1dc] sm:$0xf] %vm2667, %v2530
        %2788 = vst.msk [vmem:[%s208 + $0x1e0] sm:$0xf] %vm2667, %v2531
        %2789 = vst.msk [vmem:[%s208 + $0x1e4] sm:$0xf] %vm2667, %v2532
        %2790 = vst.msk [vmem:[%s208 + $0x1e8] sm:$0xf] %vm2667, %v2533
        %2791 = vst.msk [vmem:[%s208 + $0x1ec] sm:$0xf] %vm2667, %v2534
        %2792 = vst.msk [vmem:[%s208 + $0x1f0] sm:$0xf] %vm2667, %v2535
        %2793 = vst.msk [vmem:[%s208 + $0x1f4] sm:$0xf] %vm2667, %v2536
        %2794 = vst.msk [vmem:[%s208 + $0x1f8] sm:$0xf] %vm2667, %v2537
        %2795 = vst.msk [vmem:[%s208 + $0x1fc] sm:$0xf] %vm2667, %v2538
        %s2796 = sand.u32 %s115, 1
        %s2797 = scalar_lea.sflag [#allocation3], %s2796
        %s2798 = sand.u32 %s115, 1
        %s2799 = smul.addr %s2798, 512
        %s2800 = scalar_lea.vmem [#allocation2], %s2799
        // Predicated region
        $region37: #{conv_bn.1} parent=35 // pred_check
          %p2801 = pneg %p125
        $region38: #{conv_bn.1} parent=35 // pred_check_branch
          %2803 = sbr.rel (%p2801) target = $region40
        $region39: #{conv_bn.1} parent=35 // pred_region
          %s2804 = smul.u32 128, %s18
          %s2805 = ssub.s32 3136, %s2804
          %p2806 = scmp.lt.s32.totalorder %s2805, 128
          %s2807 = scalar_select %p2806, %s2805, 128
          %s2808 = smul.u32 64, %s2807
          %s2810 = ssub.s32 8192, %s2808
          %2811 = vsyncadd %s2797, %s2810
          %p2812 = scmp.ne.s32.totalorder 0, %s2808
          %s2813 = smul.addr %s2804, 64
          %s2814 = scalar_lea.hbm %s4, %s2813
          %s2815 = smul.u32 4, %s2807
          %s2816 = sshll.u32 %s2800, 4
          %s2817 = int_to_ptr.vmem [resolvable:$true] %s2816
          %s2818 = sshll.u32 %s2815, 4
          %2822 = dma.vmem_to_hbm [thread:$0]  (%p2812), %s2817, %s2818, %s2814, %s2797, 64, 64, 4
        $region40: #{conv_bn.1} parent=35 // pred_fallthru
          _
      $region36: #{conv_bn.1} parent=5 // pred_fallthru
        _
      %p2823 = scmp.le.s32.totalorder 2, %s13
      // Predicated region
      $region41: #{conv_bn.1} parent=5 // pred_check
        %p2824 = pneg %p2823
      $region42: #{conv_bn.1} parent=5 // pred_check_branch
        %2826 = sbr.rel (%p2824) target = $region44
      $region43: #{conv_bn.1} parent=5 // pred_region
        %s2827 = ssub.s32 %s13, 2
        // Predicated region
        $region45: #{conv_bn.1} parent=43 // pred_check
          %p2828 = pneg %p131
        $region46: #{conv_bn.1} parent=43 // pred_check_branch
          %2830 = sbr.rel (%p2828) target = $region48
        $region47: #{conv_bn.1} parent=43 // pred_region
          %s2831 = sand.u32 %s116, 1
          %s2832 = scalar_lea.sflag [#allocation3], %s2831
          %s2833 = sand.u32 %s116, 1
          %s2834 = smul.addr %s2833, 512
          %s2835 = scalar_lea.vmem [#allocation2], %s2834
          %2836 = dma.done %s2832, 8192
        $region48: #{conv_bn.1} parent=43 // pred_fallthru
          _
      $region44: #{conv_bn.1} parent=5 // pred_fallthru
        _
    $region6: #{conv_bn.1} parent=1 // loop_footer
      %s17 = sadd.s32 1, %s13
    $region7: #{conv_bn.1} parent=1 // loop_footer_branch
      %12 = sbr.rel target = $region3
    $region8: #{conv_bn.1} parent=1 // loop_exit
      _
    %2837 = vsyncpa [#allocation3], 1
    %s2838 = scalar_lea.sflag [#allocation3], 1
    %2839 = vsyncpa %s2838, 1

</llo_original>
